<compile_context>
chip_gen: v6e
topology: v6e:2x2x1
jax: 0.10.0
libtpu: 0.0.40
codegen_flags: <defaults>
</compile_context>

<pallas_src>
import functools

import jax
import jax.numpy as jnp
from jax.experimental import pallas as pl
from jax.experimental.pallas import tpu as pltpu

EPS = 1e-15  # matches norm(vec): sqrt(sum_xyz(vec**2 + eps))


def update_block_kernel(s_ref, v_ref, wuv_ref, w1s_ref, w1v_ref, b1_ref,
                        w2_ref, b2_ref, ds_ref, dv_ref):
    _, TN, F = v_ref.shape
    cd = wuv_ref.dtype  # MXU compute dtype (bf16 or f32)

    # ---- fused equivariant projections: one (3*TN, F) @ (F, 2F) matmul ----
    v = v_ref[...]                                   # (3, TN, F), compute dtype
    vf = v.reshape(3 * TN, F)                        # free sublane merge (TN % 8 == 0)
    uv = jnp.dot(vf, wuv_ref[...], preferred_element_type=jnp.float32)   # (3TN, 2F) f32
    uv = uv.reshape(3, TN, 2 * F)
    u_v = uv[..., :F]                                # (3, TN, F) f32
    v_v = uv[..., F:]                                # (3, TN, F) f32

    # ---- norm over xyz: three VPU adds, no sublane reduce ----
    sq = v_v * v_v + EPS                             # per-component eps (matches ref)
    v_v_norm = jnp.sqrt(sq[0] + sq[1] + sq[2])       # (TN, F) f32

    # ---- s_dense: Dense(2F->F, bias, SiLU) ; Dense(F->3F, bias) ----
    # concat eliminated: [s | norm] @ w1 == s @ w1_s + norm @ w1_v
    # NOTE: the two K=F matmuls could be re-fused into one K=2F matmul to fill
    # the 256-deep MXU on v6e/v7x, but at F=128 the kernel is memory-bound so
    # the split (which avoids a lane-axis concat) is kept.
    h = (jnp.dot(s_ref[...].astype(cd), w1s_ref[...], preferred_element_type=jnp.float32)
         + jnp.dot(v_v_norm.astype(cd), w1v_ref[...], preferred_element_type=jnp.float32)
         + b1_ref[...])
    h = h * jax.nn.sigmoid(h)                        # SiLU (f32); dropout = identity (eval)
    out3 = jnp.dot(h.astype(cd), w2_ref[...], preferred_element_type=jnp.float32) + b2_ref[...]

    a_vv = out3[:, 0:F]                              # (TN, F)
    a_sv = out3[:, F:2 * F]
    a_ss = out3[:, 2 * F:3 * F]

    # delta_v = u_v * a_vv (broadcast over xyz axis)
    dv_ref[...] = (u_v * a_vv[None, :, :]).astype(dv_ref.dtype)

    # delta_s = <u_v, v_v>_xyz * a_sv + a_ss    (xyz sum = 3 VPU fmas)
    inner = u_v[0] * v_v[0] + u_v[1] * v_v[1] + u_v[2] * v_v[2]
    ds_ref[...] = (inner * a_sv + a_ss).astype(ds_ref.dtype)


def _round8(x):
    return -(-x // 8) * 8


def _pick_tile(n, tile_n):
    """Atom tile: <= tile_n, multiple of 8, and >=2 grid steps when N allows
    (so v7x's two TensorCores both get work on the 'parallel' axis)."""
    tn = min(int(tile_n), _round8(n))
    if n <= tn and n > 8:
        tn = _round8(-(-n // 2))      # split a would-be single tile in two
    return max(8, _round8(tn))


@functools.partial(jax.jit, static_argnames=("tile_n", "compute_dtype", "out_dtype"))
def update_block_3nf(s_i, v_3nf, params, *, tile_n=256,
                     compute_dtype=jnp.bfloat16, out_dtype=None):
    """Fast path.  s_i: (N, F); v_3nf: (3, N, F).  Returns (delta_s (N, F),
    delta_v (3, N, F)).  No relayout / pad passes over the inputs or outputs."""
    N, F = s_i.shape
    cd = compute_dtype
    cd_bytes = jnp.dtype(cd).itemsize
    ds_dtype = out_dtype if out_dtype is not None else s_i.dtype
    dv_dtype = out_dtype if out_dtype is not None else v_3nf.dtype

    TN = _pick_tile(N, tile_n)
    num_tiles = pl.cdiv(N, TN)        # ragged last tile handled by Pallas

    # ---- weight prep: fuse wu||wv, split w1, cast MXU operands ----
    wuv = jnp.concatenate([params["wu"], params["wv"]], axis=1).astype(cd)   # (F, 2F)
    w1s = params["w1"][:F, :].astype(cd)                                     # (F, F)
    w1v = params["w1"][F:, :].astype(cd)                                     # (F, F)
    w2 = params["w2"].astype(cd)                                             # (F, 3F)
    b1 = params["b1"].astype(jnp.float32)                                    # (1, F)
    b2 = params["b2"].astype(jnp.float32)                                    # (1, 3F)

    # cast activation streams to the compute dtype once, in HBM (halves s/v input bytes)
    s = s_i.astype(cd)
    v = v_3nf.astype(cd)

    const2 = lambda i: (0, 0)         # weights resident in VMEM across grid steps

    cost = pl.CostEstimate(
        flops=22 * N * F * F,
        transcendentals=2 * N * F,
        bytes_accessed=(4 * N * F * cd_bytes)                      # s + v in
                       + 7 * F * F * cd_bytes + 16 * F             # weights, biases
                       + N * F * jnp.dtype(ds_dtype).itemsize      # delta_s out
                       + 3 * N * F * jnp.dtype(dv_dtype).itemsize, # delta_v out
    )

    delta_s, delta_v = pl.pallas_call(
        update_block_kernel,
        out_shape=(
            jax.ShapeDtypeStruct((N, F), ds_dtype),
            jax.ShapeDtypeStruct((3, N, F), dv_dtype),
        ),
        grid=(num_tiles,),
        in_specs=[
            pl.BlockSpec((TN, F), lambda i: (i, 0)),          # s
            pl.BlockSpec((3, TN, F), lambda i: (0, i, 0)),    # v (3, N, F) layout
            pl.BlockSpec((F, 2 * F), const2),                 # wuv
            pl.BlockSpec((F, F), const2),                     # w1_s
            pl.BlockSpec((F, F), const2),                     # w1_v
            pl.BlockSpec((1, F), const2),                     # b1
            pl.BlockSpec((F, 3 * F), const2),                 # w2
            pl.BlockSpec((1, 3 * F), const2),                 # b2
        ],
        out_specs=(
            pl.BlockSpec((TN, F), lambda i: (i, 0)),          # delta_s
            pl.BlockSpec((3, TN, F), lambda i: (0, i, 0)),    # delta_v (3, N, F)
        ),
        compiler_params=pltpu.CompilerParams(
            dimension_semantics=("parallel",),                # shards tiles across v7x's 2 TCs
            vmem_limit_bytes=32 * 1024 * 1024,                # safe under v7x's 64 MiB physical
        ),
        cost_estimate=cost,
    )(s, v, wuv, w1s, w1v, b1, w2, b2)

    return delta_s, delta_v


@functools.partial(jax.jit, static_argnames=("tile_n", "compute_dtype", "out_dtype"))
def update_block(s_i, v_i, params, *, tile_n=256,
                 compute_dtype=jnp.bfloat16, out_dtype=None):
    """PyTorch-convention adapter: s_i (N, F), v_i (N, F, 3) -> delta_s (N, F),
    delta_v (N, F, 3).  The two transposes exist only to honor that interface;
    carry v as (3, N, F) end-to-end and call update_block_3nf() to avoid them."""
    v_3nf = jnp.transpose(v_i, (2, 0, 1))
    delta_s, delta_v_3nf = update_block_3nf(
        s_i, v_3nf, params, tile_n=tile_n,
        compute_dtype=compute_dtype, out_dtype=out_dtype)
    return delta_s, jnp.transpose(delta_v_3nf, (1, 2, 0))


def make_params(key, n_atom_basis):
    F = n_atom_basis
    ks = jax.random.split(key, 6)
    scale = 0.1
    return {
        "wu": scale * jax.random.normal(ks[0], (F, F), jnp.float32),
        "wv": scale * jax.random.normal(ks[1], (F, F), jnp.float32),
        "w1": scale * jax.random.normal(ks[2], (2 * F, F), jnp.float32),
        "b1": scale * jax.random.normal(ks[3], (1, F), jnp.float32),
        "w2": scale * jax.random.normal(ks[4], (F, 3 * F), jnp.float32),
        "b2": scale * jax.random.normal(ks[5], (1, 3 * F), jnp.float32),
    }


def update_block_ref(s_i, v_i, params, compute_dtype=jnp.float32):
    """Pure-JAX reference mirroring the PyTorch forward (optionally with bf16 MXU operands)."""
    N, F, _ = v_i.shape
    cd, f32 = compute_dtype, jnp.float32
    wu, wv = params["wu"].astype(cd), params["wv"].astype(cd)
    w1, w2 = params["w1"].astype(cd), params["w2"].astype(cd)
    b1, b2 = params["b1"].astype(f32), params["b2"].astype(f32)

    v_t = jnp.transpose(v_i, (0, 2, 1)).reshape(-1, F).astype(cd)                     # (3N, F)
    u_v = jnp.transpose(jnp.dot(v_t, wu, preferred_element_type=f32).reshape(N, 3, F), (0, 2, 1))
    v_v = jnp.transpose(jnp.dot(v_t, wv, preferred_element_type=f32).reshape(N, 3, F), (0, 2, 1))
    v_v_norm = jnp.sqrt(jnp.sum(v_v ** 2 + EPS, axis=-1))                             # (N, F)
    s_stack = jnp.concatenate([s_i, v_v_norm], axis=-1).astype(cd)
    h = jnp.dot(s_stack, w1, preferred_element_type=f32) + b1
    h = h * jax.nn.sigmoid(h)
    split = (jnp.dot(h.astype(cd), w2, preferred_element_type=f32) + b2).reshape(N, 3, F)
    delta_v = u_v * split[:, 0, :][..., None]
    inner = jnp.sum(u_v * v_v, axis=-1)
    delta_s = inner * split[:, 1, :] + split[:, 2, :]
    return delta_s, delta_v


if __name__ == "__main__":
    N = 200    # atoms; not a multiple of 8 -> exercises the ragged last tile
    F = 128    # n_atom_basis (lane-aligned)

    key = jax.random.PRNGKey(0)
    kp, ks, kv = jax.random.split(key, 3)
    params = make_params(kp, F)
    s_i = jax.random.normal(ks, (N, F), jnp.float32)
    v_i = jax.random.normal(kv, (N, F, 3), jnp.float32)

    # 1) exact-semantics path (f32 MXU operands), 2-step grid with a ragged last tile
    ds32, dv32 = update_block(s_i, v_i, params, tile_n=128, compute_dtype=jnp.float32)
    jax.block_until_ready((ds32, dv32))
    rs32, rv32 = update_block_ref(s_i, v_i, params, compute_dtype=jnp.float32)
    assert ds32.shape == (N, F) and dv32.shape == (N, F, 3)
    assert jnp.allclose(ds32, rs32, atol=1e-4, rtol=1e-4)
    assert jnp.allclose(dv32, rv32, atol=1e-4, rtol=1e-4)

    # 2) optimized default path (bf16 MXU operands/streams, f32 accumulate & pointwise)
    ds, dv = update_block(s_i, v_i, params)
    jax.block_until_ready((ds, dv))
    rs, rv = update_block_ref(s_i, v_i, params, compute_dtype=jnp.bfloat16)
    assert jnp.allclose(ds, rs, atol=2e-2, rtol=2e-2)
    assert jnp.allclose(dv, rv, atol=2e-2, rtol=2e-2)

    # 3) layout fast path ((3, N, F) in/out, no transpose passes) with bf16 outputs
    v_3nf = jnp.transpose(v_i, (2, 0, 1))
    ds_b, dv_b = update_block_3nf(s_i, v_3nf, params, out_dtype=jnp.bfloat16)
    jax.block_until_ready((ds_b, dv_b))
    assert ds_b.dtype == jnp.bfloat16 and dv_b.dtype == jnp.bfloat16
    assert ds_b.shape == (N, F) and dv_b.shape == (3, N, F)
    assert jnp.allclose(ds_b.astype(jnp.float32), ds, atol=0.3, rtol=0.05)
    assert jnp.allclose(dv_b.astype(jnp.float32),
                        jnp.transpose(dv, (2, 0, 1)), atol=0.3, rtol=0.05)

    print("KERNEL_OK")
</pallas_src>

<mosaic_0001>
module attributes {stable_mosaic.version = 11 : i64} {
  func.func @update_block_kernel(%arg0: i32, %arg1: memref<128x128xf32, #tpu.memory_space<vmem>>, %arg2: memref<3x128x128xf32, #tpu.memory_space<vmem>>, %arg3: memref<128x256xf32, #tpu.memory_space<vmem>>, %arg4: memref<128x128xf32, #tpu.memory_space<vmem>>, %arg5: memref<128x128xf32, #tpu.memory_space<vmem>>, %arg6: memref<1x128xf32, #tpu.memory_space<vmem>>, %arg7: memref<128x384xf32, #tpu.memory_space<vmem>>, %arg8: memref<1x384xf32, #tpu.memory_space<vmem>>, %arg9: memref<128x128xf32, #tpu.memory_space<vmem>>, %arg10: memref<3x128x128xf32, #tpu.memory_space<vmem>>) attributes {dimension_semantics = [#tpu.dimension_semantics<parallel>], iteration_bounds = array<i64: 2>, scalar_prefetch = 0 : i64, scratch_operands = 0 : i64, tpu.core_type = #tpu.core_type<tc>, window_params = [{transform_indices = @transform_0, window_bounds = array<i64: 128, 128>}, {transform_indices = @transform_1, window_bounds = array<i64: 3, 128, 128>}, {pipeline_mode = #tpu.pipeline_mode<synchronous>, transform_indices = @transform_2, window_bounds = array<i64: 128, 256>}, {pipeline_mode = #tpu.pipeline_mode<synchronous>, transform_indices = @transform_3, window_bounds = array<i64: 128, 128>}, {pipeline_mode = #tpu.pipeline_mode<synchronous>, transform_indices = @transform_4, window_bounds = array<i64: 128, 128>}, {pipeline_mode = #tpu.pipeline_mode<synchronous>, transform_indices = @transform_5, window_bounds = array<i64: 1, 128>}, {pipeline_mode = #tpu.pipeline_mode<synchronous>, transform_indices = @transform_6, window_bounds = array<i64: 128, 384>}, {pipeline_mode = #tpu.pipeline_mode<synchronous>, transform_indices = @transform_7, window_bounds = array<i64: 1, 384>}, {transform_indices = @transform_8, window_bounds = array<i64: 128, 128>}, {transform_indices = @transform_9, window_bounds = array<i64: 3, 128, 128>}]} {
    %c0 = arith.constant 0 : index
    %c0_0 = arith.constant 0 : index
    %c0_1 = arith.constant 0 : index
    %0 = vector.load %arg2[%c0, %c0_0, %c0_1] : memref<3x128x128xf32, #tpu.memory_space<vmem>>, vector<3x128x128xf32>
    %1 = vector.shape_cast %0 : vector<3x128x128xf32> to vector<384x128xf32>
    %c0_2 = arith.constant 0 : index
    %c0_3 = arith.constant 0 : index
    %2 = vector.load %arg3[%c0_2, %c0_3] : memref<128x256xf32, #tpu.memory_space<vmem>>, vector<128x256xf32>
    %cst = arith.constant dense<0.000000e+00> : vector<384x256xf32>
    %3 = tpu.matmul %1, %2, %cst {dimension_numbers = #tpu.dot_dimension_numbers<[1], [0], [0], [1], [0, 0, 1, 1], [], []>} : vector<384x128xf32>, vector<128x256xf32>, vector<384x256xf32> -> vector<384x256xf32>
    %4 = vector.shape_cast %3 : vector<384x256xf32> to vector<3x128x256xf32>
    %5 = vector.extract_strided_slice %4 {offsets = [0, 0, 0], sizes = [3, 128, 128], strides = [1, 1, 1]} : vector<3x128x256xf32> to vector<3x128x128xf32>
    %6 = vector.extract_strided_slice %4 {offsets = [0, 0, 128], sizes = [3, 128, 128], strides = [1, 1, 1]} : vector<3x128x256xf32> to vector<3x128x128xf32>
    %7 = arith.mulf %6, %6 : vector<3x128x128xf32>
    %cst_4 = arith.constant 1.000000e-15 : f32
    %8 = vector.broadcast %cst_4 : f32 to vector<3x128x128xf32>
    %9 = arith.addf %7, %8 : vector<3x128x128xf32>
    %10 = vector.extract_strided_slice %9 {offsets = [0, 0, 0], sizes = [1, 128, 128], strides = [1, 1, 1]} : vector<3x128x128xf32> to vector<1x128x128xf32>
    %11 = vector.shape_cast %10 : vector<1x128x128xf32> to vector<128x128xf32>
    %12 = vector.extract_strided_slice %9 {offsets = [1, 0, 0], sizes = [1, 128, 128], strides = [1, 1, 1]} : vector<3x128x128xf32> to vector<1x128x128xf32>
    %13 = vector.shape_cast %12 : vector<1x128x128xf32> to vector<128x128xf32>
    %14 = arith.addf %11, %13 : vector<128x128xf32>
    %15 = vector.extract_strided_slice %9 {offsets = [2, 0, 0], sizes = [1, 128, 128], strides = [1, 1, 1]} : vector<3x128x128xf32> to vector<1x128x128xf32>
    %16 = vector.shape_cast %15 : vector<1x128x128xf32> to vector<128x128xf32>
    %17 = arith.addf %14, %16 : vector<128x128xf32>
    %18 = math.sqrt %17 : vector<128x128xf32>
    %c0_5 = arith.constant 0 : index
    %c0_6 = arith.constant 0 : index
    %19 = vector.load %arg1[%c0_5, %c0_6] : memref<128x128xf32, #tpu.memory_space<vmem>>, vector<128x128xf32>
    %c0_7 = arith.constant 0 : index
    %c0_8 = arith.constant 0 : index
    %20 = vector.load %arg4[%c0_7, %c0_8] : memref<128x128xf32, #tpu.memory_space<vmem>>, vector<128x128xf32>
    %cst_9 = arith.constant dense<0.000000e+00> : vector<128x128xf32>
    %21 = tpu.matmul %19, %20, %cst_9 {dimension_numbers = #tpu.dot_dimension_numbers<[1], [0], [0], [1], [0, 0, 1, 1], [], []>} : vector<128x128xf32>, vector<128x128xf32>, vector<128x128xf32> -> vector<128x128xf32>
    %c0_10 = arith.constant 0 : index
    %c0_11 = arith.constant 0 : index
    %22 = vector.load %arg5[%c0_10, %c0_11] : memref<128x128xf32, #tpu.memory_space<vmem>>, vector<128x128xf32>
    %cst_12 = arith.constant dense<0.000000e+00> : vector<128x128xf32>
    %23 = tpu.matmul %18, %22, %cst_12 {dimension_numbers = #tpu.dot_dimension_numbers<[1], [0], [0], [1], [0, 0, 1, 1], [], []>} : vector<128x128xf32>, vector<128x128xf32>, vector<128x128xf32> -> vector<128x128xf32>
    %24 = arith.addf %21, %23 : vector<128x128xf32>
    %c0_13 = arith.constant 0 : index
    %c0_14 = arith.constant 0 : index
    %25 = vector.load %arg6[%c0_13, %c0_14] : memref<1x128xf32, #tpu.memory_space<vmem>>, vector<1x128xf32>
    %26 = vector.broadcast %25 : vector<1x128xf32> to vector<128x128xf32>
    %27 = arith.addf %24, %26 : vector<128x128xf32>
    %28 = arith.negf %27 : vector<128x128xf32>
    %29 = math.exp %28 : vector<128x128xf32>
    %cst_15 = arith.constant 1.000000e+00 : f32
    %30 = vector.broadcast %cst_15 : f32 to vector<128x128xf32>
    %31 = arith.addf %30, %29 : vector<128x128xf32>
    %32 = arith.divf %30, %31 : vector<128x128xf32>
    %33 = arith.mulf %27, %32 : vector<128x128xf32>
    %c0_16 = arith.constant 0 : index
    %c0_17 = arith.constant 0 : index
    %34 = vector.load %arg7[%c0_16, %c0_17] : memref<128x384xf32, #tpu.memory_space<vmem>>, vector<128x384xf32>
    %cst_18 = arith.constant dense<0.000000e+00> : vector<128x384xf32>
    %35 = tpu.matmul %33, %34, %cst_18 {dimension_numbers = #tpu.dot_dimension_numbers<[1], [0], [0], [1], [0, 0, 1, 1], [], []>} : vector<128x128xf32>, vector<128x384xf32>, vector<128x384xf32> -> vector<128x384xf32>
    %c0_19 = arith.constant 0 : index
    %c0_20 = arith.constant 0 : index
    %36 = vector.load %arg8[%c0_19, %c0_20] : memref<1x384xf32, #tpu.memory_space<vmem>>, vector<1x384xf32>
    %37 = vector.broadcast %36 : vector<1x384xf32> to vector<128x384xf32>
    %38 = arith.addf %35, %37 : vector<128x384xf32>
    %39 = vector.extract_strided_slice %38 {offsets = [0, 0], sizes = [128, 128], strides = [1, 1]} : vector<128x384xf32> to vector<128x128xf32>
    %40 = vector.extract_strided_slice %38 {offsets = [0, 128], sizes = [128, 128], strides = [1, 1]} : vector<128x384xf32> to vector<128x128xf32>
    %41 = vector.extract_strided_slice %38 {offsets = [0, 256], sizes = [128, 128], strides = [1, 1]} : vector<128x384xf32> to vector<128x128xf32>
    %42 = vector.shape_cast %39 : vector<128x128xf32> to vector<1x128x128xf32>
    %43 = vector.broadcast %42 : vector<1x128x128xf32> to vector<3x128x128xf32>
    %44 = arith.mulf %5, %43 : vector<3x128x128xf32>
    %c0_21 = arith.constant 0 : index
    %c0_22 = arith.constant 0 : index
    %c0_23 = arith.constant 0 : index
    %45 = vector.load %arg10[%c0_21, %c0_22, %c0_23] : memref<3x128x128xf32, #tpu.memory_space<vmem>>, vector<3x128x128xf32>
    tpu.vector_store %arg10[%c0_21, %c0_22, %c0_23], %44 {strides = array<i32>} : memref<3x128x128xf32, #tpu.memory_space<vmem>>, vector<3x128x128xf32>,
    %46 = vector.extract_strided_slice %5 {offsets = [0, 0, 0], sizes = [1, 128, 128], strides = [1, 1, 1]} : vector<3x128x128xf32> to vector<1x128x128xf32>
    %47 = vector.shape_cast %46 : vector<1x128x128xf32> to vector<128x128xf32>
    %48 = vector.extract_strided_slice %6 {offsets = [0, 0, 0], sizes = [1, 128, 128], strides = [1, 1, 1]} : vector<3x128x128xf32> to vector<1x128x128xf32>
    %49 = vector.shape_cast %48 : vector<1x128x128xf32> to vector<128x128xf32>
    %50 = arith.mulf %47, %49 : vector<128x128xf32>
    %51 = vector.extract_strided_slice %5 {offsets = [1, 0, 0], sizes = [1, 128, 128], strides = [1, 1, 1]} : vector<3x128x128xf32> to vector<1x128x128xf32>
    %52 = vector.shape_cast %51 : vector<1x128x128xf32> to vector<128x128xf32>
    %53 = vector.extract_strided_slice %6 {offsets = [1, 0, 0], sizes = [1, 128, 128], strides = [1, 1, 1]} : vector<3x128x128xf32> to vector<1x128x128xf32>
    %54 = vector.shape_cast %53 : vector<1x128x128xf32> to vector<128x128xf32>
    %55 = arith.mulf %52, %54 : vector<128x128xf32>
    %56 = arith.addf %50, %55 : vector<128x128xf32>
    %57 = vector.extract_strided_slice %5 {offsets = [2, 0, 0], sizes = [1, 128, 128], strides = [1, 1, 1]} : vector<3x128x128xf32> to vector<1x128x128xf32>
    %58 = vector.shape_cast %57 : vector<1x128x128xf32> to vector<128x128xf32>
    %59 = vector.extract_strided_slice %6 {offsets = [2, 0, 0], sizes = [1, 128, 128], strides = [1, 1, 1]} : vector<3x128x128xf32> to vector<1x128x128xf32>
    %60 = vector.shape_cast %59 : vector<1x128x128xf32> to vector<128x128xf32>
    %61 = arith.mulf %58, %60 : vector<128x128xf32>
    %62 = arith.addf %56, %61 : vector<128x128xf32>
    %63 = arith.mulf %62, %40 : vector<128x128xf32>
    %64 = arith.addf %63, %41 : vector<128x128xf32>
    %c0_24 = arith.constant 0 : index
    %c0_25 = arith.constant 0 : index
    %65 = vector.load %arg9[%c0_24, %c0_25] : memref<128x128xf32, #tpu.memory_space<vmem>>, vector<128x128xf32>
    tpu.vector_store %arg9[%c0_24, %c0_25], %64 {strides = array<i32>} : memref<128x128xf32, #tpu.memory_space<vmem>>, vector<128x128xf32>,
    return
  }
  func.func @transform_0(%arg0: i32) -> (i32, i32) {
    %c0_i32 = arith.constant 0 : i32
    %c0_i32_0 = arith.constant 0 : i32
    return %arg0, %c0_i32 : i32, i32
  }
  func.func @transform_1(%arg0: i32) -> (i32, i32, i32) {
    %c0_i32 = arith.constant 0 : i32
    %c0_i32_0 = arith.constant 0 : i32
    %c0_i32_1 = arith.constant 0 : i32
    return %c0_i32, %arg0, %c0_i32_0 : i32, i32, i32
  }
  func.func @transform_2(%arg0: i32) -> (i32, i32) {
    %c0_i32 = arith.constant 0 : i32
    %c0_i32_0 = arith.constant 0 : i32
    %c0_i32_1 = arith.constant 0 : i32
    return %c0_i32, %c0_i32_0 : i32, i32
  }
  func.func @transform_3(%arg0: i32) -> (i32, i32) {
    %c0_i32 = arith.constant 0 : i32
    %c0_i32_0 = arith.constant 0 : i32
    %c0_i32_1 = arith.constant 0 : i32
    return %c0_i32, %c0_i32_0 : i32, i32
  }
  func.func @transform_4(%arg0: i32) -> (i32, i32) {
    %c0_i32 = arith.constant 0 : i32
    %c0_i32_0 = arith.constant 0 : i32
    %c0_i32_1 = arith.constant 0 : i32
    return %c0_i32, %c0_i32_0 : i32, i32
  }
  func.func @transform_5(%arg0: i32) -> (i32, i32) {
    %c0_i32 = arith.constant 0 : i32
    %c0_i32_0 = arith.constant 0 : i32
    %c0_i32_1 = arith.constant 0 : i32
    return %c0_i32, %c0_i32_0 : i32, i32
  }
  func.func @transform_6(%arg0: i32) -> (i32, i32) {
    %c0_i32 = arith.constant 0 : i32
    %c0_i32_0 = arith.constant 0 : i32
    %c0_i32_1 = arith.constant 0 : i32
    return %c0_i32, %c0_i32_0 : i32, i32
  }
  func.func @transform_7(%arg0: i32) -> (i32, i32) {
    %c0_i32 = arith.constant 0 : i32
    %c0_i32_0 = arith.constant 0 : i32
    %c0_i32_1 = arith.constant 0 : i32
    return %c0_i32, %c0_i32_0 : i32, i32
  }
  func.func @transform_8(%arg0: i32) -> (i32, i32) {
    %c0_i32 = arith.constant 0 : i32
    %c0_i32_0 = arith.constant 0 : i32
    return %arg0, %c0_i32 : i32, i32
  }
  func.func @transform_9(%arg0: i32) -> (i32, i32, i32) {
    %c0_i32 = arith.constant 0 : i32
    %c0_i32_0 = arith.constant 0 : i32
    %c0_i32_1 = arith.constant 0 : i32
    return %c0_i32, %arg0, %c0_i32_0 : i32, i32, i32
  }
}

</mosaic_0001>

<llo_original>
// kernel: update_block_3nf.1
$region0: #{update_block_3nf.1}
  #allocation0 [shape = 'u32[]', space=smem, size = 0x4, offset = 0x4, fixed_abs, tag = 'smem constant byte address 0x4 - core index']
  #allocation1 [shape = 'u32[144,128]{1,0:T(1,128)}', space=vmem, size = 0x12000, scoped, tag = 'internal scratch']
  #allocation9 [shape = 's32[]', space=sflag, size = 0x4, offset = 0, fixed_abs, tag = 'sflag constant byte address 0x0 - dummy sync flag']
  %s0 = inlined_call_operand.hbm [shape: f32[200,128], index: 0, kind: input, shape index: {}]
  %s1 = inlined_call_operand.vmem [shape: f32[3,200,128], index: 1, kind: input, shape index: {}]
  %s2 = inlined_call_operand.vmem [shape: f32[128,256], index: 2, kind: input, shape index: {}]
  %s3 = inlined_call_operand.vmem [shape: f32[128,128], index: 3, kind: input, shape index: {}]
  %s4 = inlined_call_operand.vmem [shape: f32[128,128], index: 4, kind: input, shape index: {}]
  %s5 = inlined_call_operand.vmem [shape: f32[1,128], index: 5, kind: input, shape index: {}]
  %s6 = inlined_call_operand.vmem [shape: f32[128,384], index: 6, kind: input, shape index: {}]
  %s7 = inlined_call_operand.vmem [shape: f32[1,384], index: 7, kind: input, shape index: {}]
  %s8 = inlined_call_operand.hbm [shape: f32[200,128], index: 8, kind: output, shape index: {0}]
  %s9 = inlined_call_operand.hbm [shape: f32[3,200,128], index: 9, kind: output, shape index: {1}]
  %10 = xla_tuple %s8, %s9
  %s11 = sld [smem:[#allocation0]]
  $region129: #{update_block_3nf.1} parent=0
    _
  %s13 = ssub.s32 1, %s11
  %s14 = scalar_select 0, %s13, %s11
  $region1: #{update_block_3nf.1} parent=0
    #allocation2 [shape = 'u8[131072]{0}', space=vmem, size = 0x20000, scoped, tag = 'input window, operand 0']
    #allocation3 [shape = 's32[2]{0}', space=sflag, size = 0x8, scoped, tag = 'scoped memory for update_block_3nf.1']
    #allocation4 [shape = 's32[2]{0}', space=sflag, size = 0x8, scoped, tag = 'scoped memory for update_block_3nf.1']
    #allocation5 [shape = 'u8[393216]{0}', space=vmem, size = 0x60000, scoped, tag = 'input window, operand 1']
    #allocation6 [shape = 'u8[131072]{0}', space=vmem, size = 0x20000, scoped, tag = 'output window, operand 0']
    #allocation7 [shape = 'u8[393216]{0}', space=vmem, size = 0x60000, scoped, tag = 'output window, operand 1']
    #allocation8 [shape = 's32[2]{0}', space=sflag, size = 0x8, scoped, tag = 'scoped memory for update_block_3nf.1']
    %15 = vsyncpa [#allocation3], 0
    %s16 = scalar_lea.sflag [#allocation3], 1
    %17 = vsyncpa %s16, 0
    %18 = vsyncpa [#allocation4], 0
    %s19 = scalar_lea.sflag [#allocation4], 1
    %20 = vsyncpa %s19, 0
    %21 = vsyncpa [#allocation8], 0
    %s22 = scalar_lea.sflag [#allocation8], 1
    %23 = vsyncpa %s22, 0
    loop: start=0, step=1, limit=4
    $region2: #{update_block_3nf.1} parent=1 // loop_pre_header
      _
    $region3: #{update_block_3nf.1} parent=1 // loop_header
      %s25 = sphi 0, %s29
      %p26 = scmp.ge.s32.totalorder %s25, 4
      %s35 = sphi 0, %s37
      %s38 = sphi 0, %s35
      %s39 = sphi 0, %s38
      %s55 = sphi 0, %s39
      %s61 = sphi 0, %s63
      %s64 = sphi 0, %s61
      %s65 = sphi 0, %s64
      %s81 = sphi 0, %s65
      %s85 = sphi 0, %s85
      %s87 = sphi 0, %s85
      %s88 = sphi 0, %s87
      %s102 = sphi 0, %s88
      %s106 = sphi 0, %s106
      %s108 = sphi 0, %s106
      %s109 = sphi 0, %s108
      %s123 = sphi 0, %s109
      %s127 = sphi 0, %s127
      %s129 = sphi 0, %s127
      %s130 = sphi 0, %s129
      %s144 = sphi 0, %s130
      %s148 = sphi 0, %s148
      %s150 = sphi 0, %s148
      %s151 = sphi 0, %s150
      %s165 = sphi 0, %s151
      %s169 = sphi 0, %s169
      %s171 = sphi 0, %s169
      %s172 = sphi 0, %s171
      %s186 = sphi 0, %s172
      %s190 = sphi 0, %s190
      %s192 = sphi 0, %s190
      %s193 = sphi 0, %s192
      %s207 = sphi 0, %s193
      %s213 = sphi 0, %s215
      %s216 = sphi 0, %s213
      %s217 = sphi 0, %s216
      %s233 = sphi 0, %s217
      %s239 = sphi 0, %s241
      %s242 = sphi 0, %s239
      %s243 = sphi 0, %s242
      %s259 = sphi 0, %s243
    $region4: #{update_block_3nf.1} parent=1 // loop_header_branch
      %28 = sbr.rel (%p26) target = $region8
    $region5: #{update_block_3nf.1} parent=1 // loop_body
      %s30 = ssub.s32 %s25, 1
      %s31 = ssub.s32 %s25, 2
      %s32 = sadd.s32 %s25, 1
      %s33 = ssub.s32 %s25, %s32
      %p34 = scmp.eq.s32.totalorder %s33, 0
      %s36 = sadd.s32 %s35, 1
      %s37 = scalar_select %p34, %s35, %s36
      %p40 = pneg %p34
      %p41 = scmp.eq.s32.totalorder %s25, 1
      %p42 = por %p40, %p41
      %p43 = scmp.ne.s32.totalorder %s35, %s38
      %p44 = scmp.eq.s32.totalorder %s25, 0
      %p45 = por %p43, %p44
      %p46 = scmp.ne.s32.totalorder %s35, %s38
      %p47 = scmp.eq.s32.totalorder %s30, 1
      %p48 = por %p46, %p47
      %p49 = scmp.ne.s32.totalorder %s38, %s39
      %p50 = scmp.eq.s32.totalorder %s30, 0
      %p51 = por %p49, %p50
      %p52 = scmp.ne.s32.totalorder %s38, %s39
      %p53 = scmp.eq.s32.totalorder %s31, 1
      %p54 = por %p52, %p53
      %p56 = scmp.ne.s32.totalorder %s39, %s55
      %p57 = scmp.eq.s32.totalorder %s31, 0
      %p58 = por %p56, %p57
      %s59 = ssub.s32 %s25, %s32
      %p60 = scmp.eq.s32.totalorder %s59, 0
      %s62 = sadd.s32 %s61, 1
      %s63 = scalar_select %p60, %s61, %s62
      %p66 = pneg %p60
      %p67 = scmp.eq.s32.totalorder %s25, 1
      %p68 = por %p66, %p67
      %p69 = scmp.ne.s32.totalorder %s61, %s64
      %p70 = scmp.eq.s32.totalorder %s25, 0
      %p71 = por %p69, %p70
      %p72 = scmp.ne.s32.totalorder %s61, %s64
      %p73 = scmp.eq.s32.totalorder %s30, 1
      %p74 = por %p72, %p73
      %p75 = scmp.ne.s32.totalorder %s64, %s65
      %p76 = scmp.eq.s32.totalorder %s30, 0
      %p77 = por %p75, %p76
      %p78 = scmp.ne.s32.totalorder %s64, %s65
      %p79 = scmp.eq.s32.totalorder %s31, 1
      %p80 = por %p78, %p79
      %p82 = scmp.ne.s32.totalorder %s65, %s81
      %p83 = scmp.eq.s32.totalorder %s31, 0
      %p84 = por %p82, %p83
      %s86 = sadd.s32 %s85, 1
      %p89 = scmp.eq.s32.totalorder %s25, 1
      %p90 = scmp.ne.s32.totalorder %s85, %s87
      %p91 = scmp.eq.s32.totalorder %s25, 0
      %p92 = por %p90, %p91
      %p93 = scmp.ne.s32.totalorder %s85, %s87
      %p94 = scmp.eq.s32.totalorder %s30, 1
      %p95 = por %p93, %p94
      %p96 = scmp.ne.s32.totalorder %s87, %s88
      %p97 = scmp.eq.s32.totalorder %s30, 0
      %p98 = por %p96, %p97
      %p99 = scmp.ne.s32.totalorder %s87, %s88
      %p100 = scmp.eq.s32.totalorder %s31, 1
      %p101 = por %p99, %p100
      %p103 = scmp.ne.s32.totalorder %s88, %s102
      %p104 = scmp.eq.s32.totalorder %s31, 0
      %p105 = por %p103, %p104
      %s107 = sadd.s32 %s106, 1
      %p110 = scmp.eq.s32.totalorder %s25, 1
      %p111 = scmp.ne.s32.totalorder %s106, %s108
      %p112 = scmp.eq.s32.totalorder %s25, 0
      %p113 = por %p111, %p112
      %p114 = scmp.ne.s32.totalorder %s106, %s108
      %p115 = scmp.eq.s32.totalorder %s30, 1
      %p116 = por %p114, %p115
      %p117 = scmp.ne.s32.totalorder %s108, %s109
      %p118 = scmp.eq.s32.totalorder %s30, 0
      %p119 = por %p117, %p118
      %p120 = scmp.ne.s32.totalorder %s108, %s109
      %p121 = scmp.eq.s32.totalorder %s31, 1
      %p122 = por %p120, %p121
      %p124 = scmp.ne.s32.totalorder %s109, %s123
      %p125 = scmp.eq.s32.totalorder %s31, 0
      %p126 = por %p124, %p125
      %s128 = sadd.s32 %s127, 1
      %p131 = scmp.eq.s32.totalorder %s25, 1
      %p132 = scmp.ne.s32.totalorder %s127, %s129
      %p133 = scmp.eq.s32.totalorder %s25, 0
      %p134 = por %p132, %p133
      %p135 = scmp.ne.s32.totalorder %s127, %s129
      %p136 = scmp.eq.s32.totalorder %s30, 1
      %p137 = por %p135, %p136
      %p138 = scmp.ne.s32.totalorder %s129, %s130
      %p139 = scmp.eq.s32.totalorder %s30, 0
      %p140 = por %p138, %p139
      %p141 = scmp.ne.s32.totalorder %s129, %s130
      %p142 = scmp.eq.s32.totalorder %s31, 1
      %p143 = por %p141, %p142
      %p145 = scmp.ne.s32.totalorder %s130, %s144
      %p146 = scmp.eq.s32.totalorder %s31, 0
      %p147 = por %p145, %p146
      %s149 = sadd.s32 %s148, 1
      %p152 = scmp.eq.s32.totalorder %s25, 1
      %p153 = scmp.ne.s32.totalorder %s148, %s150
      %p154 = scmp.eq.s32.totalorder %s25, 0
      %p155 = por %p153, %p154
      %p156 = scmp.ne.s32.totalorder %s148, %s150
      %p157 = scmp.eq.s32.totalorder %s30, 1
      %p158 = por %p156, %p157
      %p159 = scmp.ne.s32.totalorder %s150, %s151
      %p160 = scmp.eq.s32.totalorder %s30, 0
      %p161 = por %p159, %p160
      %p162 = scmp.ne.s32.totalorder %s150, %s151
      %p163 = scmp.eq.s32.totalorder %s31, 1
      %p164 = por %p162, %p163
      %p166 = scmp.ne.s32.totalorder %s151, %s165
      %p167 = scmp.eq.s32.totalorder %s31, 0
      %p168 = por %p166, %p167
      %s170 = sadd.s32 %s169, 1
      %p173 = scmp.eq.s32.totalorder %s25, 1
      %p174 = scmp.ne.s32.totalorder %s169, %s171
      %p175 = scmp.eq.s32.totalorder %s25, 0
      %p176 = por %p174, %p175
      %p177 = scmp.ne.s32.totalorder %s169, %s171
      %p178 = scmp.eq.s32.totalorder %s30, 1
      %p179 = por %p177, %p178
      %p180 = scmp.ne.s32.totalorder %s171, %s172
      %p181 = scmp.eq.s32.totalorder %s30, 0
      %p182 = por %p180, %p181
      %p183 = scmp.ne.s32.totalorder %s171, %s172
      %p184 = scmp.eq.s32.totalorder %s31, 1
      %p185 = por %p183, %p184
      %p187 = scmp.ne.s32.totalorder %s172, %s186
      %p188 = scmp.eq.s32.totalorder %s31, 0
      %p189 = por %p187, %p188
      %s191 = sadd.s32 %s190, 1
      %p194 = scmp.eq.s32.totalorder %s25, 1
      %p195 = scmp.ne.s32.totalorder %s190, %s192
      %p196 = scmp.eq.s32.totalorder %s25, 0
      %p197 = por %p195, %p196
      %p198 = scmp.ne.s32.totalorder %s190, %s192
      %p199 = scmp.eq.s32.totalorder %s30, 1
      %p200 = por %p198, %p199
      %p201 = scmp.ne.s32.totalorder %s192, %s193
      %p202 = scmp.eq.s32.totalorder %s30, 0
      %p203 = por %p201, %p202
      %p204 = scmp.ne.s32.totalorder %s192, %s193
      %p205 = scmp.eq.s32.totalorder %s31, 1
      %p206 = por %p204, %p205
      %p208 = scmp.ne.s32.totalorder %s193, %s207
      %p209 = scmp.eq.s32.totalorder %s31, 0
      %p210 = por %p208, %p209
      %s211 = ssub.s32 %s25, %s32
      %p212 = scmp.eq.s32.totalorder %s211, 0
      %s214 = sadd.s32 %s213, 1
      %s215 = scalar_select %p212, %s213, %s214
      %p218 = pneg %p212
      %p219 = scmp.eq.s32.totalorder %s25, 1
      %p220 = por %p218, %p219
      %p221 = scmp.ne.s32.totalorder %s213, %s216
      %p222 = scmp.eq.s32.totalorder %s25, 0
      %p223 = por %p221, %p222
      %p224 = scmp.ne.s32.totalorder %s213, %s216
      %p225 = scmp.eq.s32.totalorder %s30, 1
      %p226 = por %p224, %p225
      %p227 = scmp.ne.s32.totalorder %s216, %s217
      %p228 = scmp.eq.s32.totalorder %s30, 0
      %p229 = por %p227, %p228
      %p230 = scmp.ne.s32.totalorder %s216, %s217
      %p231 = scmp.eq.s32.totalorder %s31, 1
      %p232 = por %p230, %p231
      %p234 = scmp.ne.s32.totalorder %s217, %s233
      %p235 = scmp.eq.s32.totalorder %s31, 0
      %p236 = por %p234, %p235
      %s237 = ssub.s32 %s25, %s32
      %p238 = scmp.eq.s32.totalorder %s237, 0
      %s240 = sadd.s32 %s239, 1
      %s241 = scalar_select %p238, %s239, %s240
      %p244 = pneg %p238
      %p245 = scmp.eq.s32.totalorder %s25, 1
      %p246 = por %p244, %p245
      %p247 = scmp.ne.s32.totalorder %s239, %s242
      %p248 = scmp.eq.s32.totalorder %s25, 0
      %p249 = por %p247, %p248
      %p250 = scmp.ne.s32.totalorder %s239, %s242
      %p251 = scmp.eq.s32.totalorder %s30, 1
      %p252 = por %p250, %p251
      %p253 = scmp.ne.s32.totalorder %s242, %s243
      %p254 = scmp.eq.s32.totalorder %s30, 0
      %p255 = por %p253, %p254
      %p256 = scmp.ne.s32.totalorder %s242, %s243
      %p257 = scmp.eq.s32.totalorder %s31, 1
      %p258 = por %p256, %p257
      %p260 = scmp.ne.s32.totalorder %s243, %s259
      %p261 = scmp.eq.s32.totalorder %s31, 0
      %p262 = por %p260, %p261
      %p263 = scmp.le.s32.totalorder 1, %s25
      %p264 = scmp.lt.s32.totalorder %s25, 3
      %p265 = pnand %p263, %p264
      %p266 = pneg %p265
      // Predicated region
      $region9: #{update_block_3nf.1} parent=5 // pred_check
        _
      $region10: #{update_block_3nf.1} parent=5 // pred_check_branch
        %268 = sbr.rel (%p265) target = $region12
      $region11: #{update_block_3nf.1} parent=5 // pred_region
        %s269 = ssub.s32 %s25, 1
        // Predicated region
        $region13: #{update_block_3nf.1} parent=11 // pred_check
          %p270 = pneg %p98
        $region14: #{update_block_3nf.1} parent=11 // pred_check_branch
          %272 = sbr.rel (%p270) target = $region16
        $region15: #{update_block_3nf.1} parent=11 // pred_region
          _
        $region16: #{update_block_3nf.1} parent=11 // pred_fallthru
          _
        // Predicated region
        $region17: #{update_block_3nf.1} parent=11 // pred_check
          %p273 = pneg %p119
        $region18: #{update_block_3nf.1} parent=11 // pred_check_branch
          %275 = sbr.rel (%p273) target = $region20
        $region19: #{update_block_3nf.1} parent=11 // pred_region
          _
        $region20: #{update_block_3nf.1} parent=11 // pred_fallthru
          _
        // Predicated region
        $region21: #{update_block_3nf.1} parent=11 // pred_check
          %p276 = pneg %p140
        $region22: #{update_block_3nf.1} parent=11 // pred_check_branch
          %278 = sbr.rel (%p276) target = $region24
        $region23: #{update_block_3nf.1} parent=11 // pred_region
          _
        $region24: #{update_block_3nf.1} parent=11 // pred_fallthru
          _
        // Predicated region
        $region25: #{update_block_3nf.1} parent=11 // pred_check
          %p279 = pneg %p161
        $region26: #{update_block_3nf.1} parent=11 // pred_check_branch
          %281 = sbr.rel (%p279) target = $region28
        $region27: #{update_block_3nf.1} parent=11 // pred_region
          _
        $region28: #{update_block_3nf.1} parent=11 // pred_fallthru
          _
        // Predicated region
        $region29: #{update_block_3nf.1} parent=11 // pred_check
          %p282 = pneg %p182
        $region30: #{update_block_3nf.1} parent=11 // pred_check_branch
          %284 = sbr.rel (%p282) target = $region32
        $region31: #{update_block_3nf.1} parent=11 // pred_region
          _
        $region32: #{update_block_3nf.1} parent=11 // pred_fallthru
          _
        // Predicated region
        $region33: #{update_block_3nf.1} parent=11 // pred_check
          %p285 = pneg %p203
        $region34: #{update_block_3nf.1} parent=11 // pred_check_branch
          %287 = sbr.rel (%p285) target = $region36
        $region35: #{update_block_3nf.1} parent=11 // pred_region
          _
        $region36: #{update_block_3nf.1} parent=11 // pred_fallthru
          _
      $region12: #{update_block_3nf.1} parent=5 // pred_fallthru
        _
      %p288 = scmp.lt.s32.totalorder %s25, 2
      // Predicated region
      $region37: #{update_block_3nf.1} parent=5 // pred_check
        %p289 = pneg %p288
      $region38: #{update_block_3nf.1} parent=5 // pred_check_branch
        %291 = sbr.rel (%p289) target = $region40
      $region39: #{update_block_3nf.1} parent=5 // pred_region
        // Predicated region
        $region41: #{update_block_3nf.1} parent=39 // pred_check
          %p292 = pneg %p45
        $region42: #{update_block_3nf.1} parent=39 // pred_check_branch
          %294 = sbr.rel (%p292) target = $region44
        $region43: #{update_block_3nf.1} parent=39 // pred_region
          %s295 = sand.u32 %s35, 1
          %s296 = scalar_lea.sflag [#allocation3], %s295
          %s297 = sand.u32 %s35, 1
          %s298 = smul.addr %s297, 128
          %s299 = scalar_lea.vmem [#allocation2], %s298
          %s300 = smul.u32 16, %s25
          %s301 = ssub.s32 25, %s300
          %p302 = scmp.lt.s32.totalorder %s301, 16
          %s303 = scalar_select %p302, %s301, 16
          %s304 = smul.u32 128, %s303
          %s306 = ssub.s32 2048, %s304
          %307 = vsyncadd %s296, %s306
          %p308 = scmp.ne.s32.totalorder 0, %s304
          %s309 = smul.addr %s300, 128
          %s310 = scalar_lea.hbm %s0, %s309
          %s311 = smul.u32 8, %s303
          %s312 = sshll.u32 %s299, 4
          %s313 = int_to_ptr.vmem [resolvable:$true] %s312
          %s314 = sshll.u32 %s311, 4
          %318 = dma.hbm_to_vmem [thread:$0]  (%p308), %s310, %s314, %s313, %s296, 128, 128, 8
        $region44: #{update_block_3nf.1} parent=39 // pred_fallthru
          _
        // Predicated region
        $region45: #{update_block_3nf.1} parent=39 // pred_check
          %p319 = pneg %p71
        $region46: #{update_block_3nf.1} parent=39 // pred_check_branch
          %321 = sbr.rel (%p319) target = $region48
        $region47: #{update_block_3nf.1} parent=39 // pred_region
          %s322 = sand.u32 %s61, 1
          %s323 = sand.u32 %s61, 1
          %s324 = smul.addr %s323, 384
          %s325 = scalar_lea.vmem [#allocation5], %s324
          %s326 = smul.u32 16, %s25
          %s327 = ssub.s32 25, %s326
          %p328 = scmp.lt.s32.totalorder %s327, 16
          %s329 = scalar_select %p328, %s327, 16
          %s330 = smul.u32 384, %s329
          %p331 = scmp.ne.s32.totalorder 0, %s330
          %s332 = smul.addr %s326, 8
          %s333 = scalar_lea.vmem %s1, %s332
          // Predicated region
          $region49: #{update_block_3nf.1} parent=47 // pred_check
            %p334 = pneg %p331
          $region50: #{update_block_3nf.1} parent=47 // pred_check_branch
            %336 = sbr.rel (%p334) target = $region52
          $region51: #{update_block_3nf.1} parent=47 // pred_region
            // Predicated region
            $region53: #{update_block_3nf.1} parent=51 // pred_check
              _
            $region54: #{update_block_3nf.1} parent=51 // pred_check_branch
              %338 = sbr.rel (0) target = $region56
            $region55: #{update_block_3nf.1} parent=51 // pred_region
              // Predicated region
              $region75: #{update_block_3nf.1} parent=55 // pred_check
                _
              $region76: #{update_block_3nf.1} parent=55 // pred_check_branch
                %486 = sbr.rel (0) target = $region78
              $region77: #{update_block_3nf.1} parent=55 // pred_region
                %s487 = sshrl.u32 %s329, 4
                // While loop
                $region79: #{update_block_3nf.1} parent=77 // loop_pre_header
                  _
                $region80: #{update_block_3nf.1} parent=77 // loop_header
                  %s489 = sphi 0, %s491
                  %p490 = scmp.ge.s32.totalorder %s489, %s487
                  %s494 = sphi 0, %s595
                  %s495 = sphi %s333, %s598
                  %s496 = sphi %s325, %s599
                $region81: #{update_block_3nf.1} parent=77 // loop_header_branch
                  %493 = sbr.rel (%p490) target = $region85
                $region82: #{update_block_3nf.1} parent=77 // loop_body
                  %v497 = vld [vmem:[%s495] sm:$0xff]
                  %498 = vst [vmem:[%s496] sm:$0xff] %v497
                  %v499 = vld [vmem:[%s495 + $0x8] sm:$0xff]
                  %500 = vst [vmem:[%s496 + $0x8] sm:$0xff] %v499
                  %v501 = vld [vmem:[%s495 + $0x10] sm:$0xff]
                  %502 = vst [vmem:[%s496 + $0x10] sm:$0xff] %v501
                  %v503 = vld [vmem:[%s495 + $0x18] sm:$0xff]
                  %504 = vst [vmem:[%s496 + $0x18] sm:$0xff] %v503
                  %v505 = vld [vmem:[%s495 + $0x20] sm:$0xff]
                  %506 = vst [vmem:[%s496 + $0x20] sm:$0xff] %v505
                  %v507 = vld [vmem:[%s495 + $0x28] sm:$0xff]
                  %508 = vst [vmem:[%s496 + $0x28] sm:$0xff] %v507
                  %v509 = vld [vmem:[%s495 + $0x30] sm:$0xff]
                  %510 = vst [vmem:[%s496 + $0x30] sm:$0xff] %v509
                  %v511 = vld [vmem:[%s495 + $0x38] sm:$0xff]
                  %512 = vst [vmem:[%s496 + $0x38] sm:$0xff] %v511
                  %v513 = vld [vmem:[%s495 + $0x40] sm:$0xff]
                  %514 = vst [vmem:[%s496 + $0x40] sm:$0xff] %v513
                  %v515 = vld [vmem:[%s495 + $0x48] sm:$0xff]
                  %516 = vst [vmem:[%s496 + $0x48] sm:$0xff] %v515
                  %v517 = vld [vmem:[%s495 + $0x50] sm:$0xff]
                  %518 = vst [vmem:[%s496 + $0x50] sm:$0xff] %v517
                  %v519 = vld [vmem:[%s495 + $0x58] sm:$0xff]
                  %520 = vst [vmem:[%s496 + $0x58] sm:$0xff] %v519
                  %v521 = vld [vmem:[%s495 + $0x60] sm:$0xff]
                  %522 = vst [vmem:[%s496 + $0x60] sm:$0xff] %v521
                  %v523 = vld [vmem:[%s495 + $0x68] sm:$0xff]
                  %524 = vst [vmem:[%s496 + $0x68] sm:$0xff] %v523
                  %v525 = vld [vmem:[%s495 + $0x70] sm:$0xff]
                  %526 = vst [vmem:[%s496 + $0x70] sm:$0xff] %v525
                  %v527 = vld [vmem:[%s495 + $0x78] sm:$0xff]
                  %528 = vst [vmem:[%s496 + $0x78] sm:$0xff] %v527
                  %v529 = vld [vmem:[%s495 + $0xc8] sm:$0xff]
                  %530 = vst [vmem:[%s496 + $0x80] sm:$0xff] %v529
                  %v531 = vld [vmem:[%s495 + $0xd0] sm:$0xff]
                  %532 = vst [vmem:[%s496 + $0x88] sm:$0xff] %v531
                  %v533 = vld [vmem:[%s495 + $0xd8] sm:$0xff]
                  %534 = vst [vmem:[%s496 + $0x90] sm:$0xff] %v533
                  %v535 = vld [vmem:[%s495 + $0xe0] sm:$0xff]
                  %536 = vst [vmem:[%s496 + $0x98] sm:$0xff] %v535
                  %v537 = vld [vmem:[%s495 + $0xe8] sm:$0xff]
                  %538 = vst [vmem:[%s496 + $0xa0] sm:$0xff] %v537
                  %v539 = vld [vmem:[%s495 + $0xf0] sm:$0xff]
                  %540 = vst [vmem:[%s496 + $0xa8] sm:$0xff] %v539
                  %v541 = vld [vmem:[%s495 + $0xf8] sm:$0xff]
                  %542 = vst [vmem:[%s496 + $0xb0] sm:$0xff] %v541
                  %v543 = vld [vmem:[%s495 + $0x100] sm:$0xff]
                  %544 = vst [vmem:[%s496 + $0xb8] sm:$0xff] %v543
                  %v545 = vld [vmem:[%s495 + $0x108] sm:$0xff]
                  %546 = vst [vmem:[%s496 + $0xc0] sm:$0xff] %v545
                  %v547 = vld [vmem:[%s495 + $0x110] sm:$0xff]
                  %548 = vst [vmem:[%s496 + $0xc8] sm:$0xff] %v547
                  %v549 = vld [vmem:[%s495 + $0x118] sm:$0xff]
                  %550 = vst [vmem:[%s496 + $0xd0] sm:$0xff] %v549
                  %v551 = vld [vmem:[%s495 + $0x120] sm:$0xff]
                  %552 = vst [vmem:[%s496 + $0xd8] sm:$0xff] %v551
                  %v553 = vld [vmem:[%s495 + $0x128] sm:$0xff]
                  %554 = vst [vmem:[%s496 + $0xe0] sm:$0xff] %v553
                  %v555 = vld [vmem:[%s495 + $0x130] sm:$0xff]
                  %556 = vst [vmem:[%s496 + $0xe8] sm:$0xff] %v555
                  %v557 = vld [vmem:[%s495 + $0x138] sm:$0xff]
                  %558 = vst [vmem:[%s496 + $0xf0] sm:$0xff] %v557
                  %v559 = vld [vmem:[%s495 + $0x140] sm:$0xff]
                  %560 = vst [vmem:[%s496 + $0xf8] sm:$0xff] %v559
                  %v561 = vld [vmem:[%s495 + $0x190] sm:$0xff]
                  %562 = vst [vmem:[%s496 + $0x100] sm:$0xff] %v561
                  %v563 = vld [vmem:[%s495 + $0x198] sm:$0xff]
                  %564 = vst [vmem:[%s496 + $0x108] sm:$0xff] %v563
                  %v565 = vld [vmem:[%s495 + $0x1a0] sm:$0xff]
                  %566 = vst [vmem:[%s496 + $0x110] sm:$0xff] %v565
                  %v567 = vld [vmem:[%s495 + $0x1a8] sm:$0xff]
                  %568 = vst [vmem:[%s496 + $0x118] sm:$0xff] %v567
                  %v569 = vld [vmem:[%s495 + $0x1b0] sm:$0xff]
                  %570 = vst [vmem:[%s496 + $0x120] sm:$0xff] %v569
                  %v571 = vld [vmem:[%s495 + $0x1b8] sm:$0xff]
                  %572 = vst [vmem:[%s496 + $0x128] sm:$0xff] %v571
                  %v573 = vld [vmem:[%s495 + $0x1c0] sm:$0xff]
                  %574 = vst [vmem:[%s496 + $0x130] sm:$0xff] %v573
                  %v575 = vld [vmem:[%s495 + $0x1c8] sm:$0xff]
                  %576 = vst [vmem:[%s496 + $0x138] sm:$0xff] %v575
                  %v577 = vld [vmem:[%s495 + $0x1d0] sm:$0xff]
                  %578 = vst [vmem:[%s496 + $0x140] sm:$0xff] %v577
                  %v579 = vld [vmem:[%s495 + $0x1d8] sm:$0xff]
                  %580 = vst [vmem:[%s496 + $0x148] sm:$0xff] %v579
                  %v581 = vld [vmem:[%s495 + $0x1e0] sm:$0xff]
                  %582 = vst [vmem:[%s496 + $0x150] sm:$0xff] %v581
                  %v583 = vld [vmem:[%s495 + $0x1e8] sm:$0xff]
                  %584 = vst [vmem:[%s496 + $0x158] sm:$0xff] %v583
                  %v585 = vld [vmem:[%s495 + $0x1f0] sm:$0xff]
                  %586 = vst [vmem:[%s496 + $0x160] sm:$0xff] %v585
                  %v587 = vld [vmem:[%s495 + $0x1f8] sm:$0xff]
                  %588 = vst [vmem:[%s496 + $0x168] sm:$0xff] %v587
                  %v589 = vld [vmem:[%s495 + $0x200] sm:$0xff]
                  %590 = vst [vmem:[%s496 + $0x170] sm:$0xff] %v589
                  %v591 = vld [vmem:[%s495 + $0x208] sm:$0xff]
                  %592 = vst [vmem:[%s496 + $0x178] sm:$0xff] %v591
                  %s593 = sadd.s32 1, %s494
                  %p594 = scmp.ge.s32.totalorder %s593, %s487
                  %s595 = scalar_select %p594, 0, %s593
                  %s596 = smul.u32 %s595, 128
                  %s597 = smul.u32 %s595, 128
                  %s598 = scalar_lea.vmem %s333, %s596
                  %s599 = scalar_lea.vmem %s325, %s597 [#allocation5]
                $region83: #{update_block_3nf.1} parent=77 // loop_footer
                  %s491 = sadd.s32 %s489, 1
                $region84: #{update_block_3nf.1} parent=77 // loop_footer_branch
                  %488 = sbr.rel target = $region80
                $region85: #{update_block_3nf.1} parent=77 // loop_exit
                  _
                %s600 = sshrl.u32 %s329, 4
                %s601 = sand.u32 %s329, 15
                %s602 = smul.u32 %s600, 16
                %s603 = smul.u32 8, %s602
                %s604 = scalar_lea.vmem %s333, %s603
                %s605 = smul.u32 8, %s602
                %s606 = scalar_lea.vmem %s325, %s605 [#allocation5]
                // While loop
                $region86: #{update_block_3nf.1} parent=77 // loop_pre_header
                  _
                $region87: #{update_block_3nf.1} parent=77 // loop_header
                  %s608 = sphi 0, %s610
                  %p609 = scmp.ge.s32.totalorder %s608, %s601
                  %s613 = sphi 0, %s624
                  %s614 = sphi %s604, %s627
                  %s615 = sphi %s606, %s628
                $region88: #{update_block_3nf.1} parent=77 // loop_header_branch
                  %612 = sbr.rel (%p609) target = $region92
                $region89: #{update_block_3nf.1} parent=77 // loop_body
                  %v616 = vld [vmem:[%s614] sm:$0xff]
                  %617 = vst [vmem:[%s615] sm:$0xff] %v616
                  %v618 = vld [vmem:[%s614 + $0xc8] sm:$0xff]
                  %619 = vst [vmem:[%s615 + $0x80] sm:$0xff] %v618
                  %v620 = vld [vmem:[%s614 + $0x190] sm:$0xff]
                  %621 = vst [vmem:[%s615 + $0x100] sm:$0xff] %v620
                  %s622 = sadd.s32 1, %s613
                  %p623 = scmp.ge.s32.totalorder %s622, %s601
                  %s624 = scalar_select %p623, 0, %s622
                  %s625 = smul.u32 %s624, 8
                  %s626 = smul.u32 %s624, 8
                  %s627 = scalar_lea.vmem %s604, %s625
                  %s628 = scalar_lea.vmem %s606, %s626 [#allocation5]
                $region90: #{update_block_3nf.1} parent=77 // loop_footer
                  %s610 = sadd.s32 %s608, 1
                $region91: #{update_block_3nf.1} parent=77 // loop_footer_branch
                  %607 = sbr.rel target = $region87
                $region92: #{update_block_3nf.1} parent=77 // loop_exit
                  _
              $region78: #{update_block_3nf.1} parent=55 // pred_fallthru
                _
              // Predicated region
              $region93: #{update_block_3nf.1} parent=55 // pred_check
                _
              $region94: #{update_block_3nf.1} parent=55 // pred_check_branch
                %630 = sbr.rel target = $region96
              $region95: #{update_block_3nf.1} parent=55 // pred_region
                _
              $region96: #{update_block_3nf.1} parent=55 // pred_fallthru
                _
            $region56: #{update_block_3nf.1} parent=51 // pred_fallthru
              _
            // Predicated region
            $region57: #{update_block_3nf.1} parent=51 // pred_check
              _
            $region58: #{update_block_3nf.1} parent=51 // pred_check_branch
              %340 = sbr.rel target = $region60
            $region59: #{update_block_3nf.1} parent=51 // pred_region
              %s342 = ssub.s32 256, 1
              %s343 = sshrl.u32 %s329, 4
              // While loop
              $region61: #{update_block_3nf.1} parent=59 // loop_pre_header
                _
              $region62: #{update_block_3nf.1} parent=59 // loop_header
                %s345 = sphi 0, %s347
                %p346 = scmp.ge.s32.totalorder %s345, %s343
                %s350 = sphi 0, %s451
                %s351 = sphi %s333, %s454
                %s352 = sphi %s325, %s455
              $region63: #{update_block_3nf.1} parent=59 // loop_header_branch
                %349 = sbr.rel (%p346) target = $region67
              $region64: #{update_block_3nf.1} parent=59 // loop_body
                %v353 = vld [vmem:[%s351] sm:%s342]
                %354 = vst [vmem:[%s352] sm:%s342] %v353
                %v355 = vld [vmem:[%s351 + $0x8] sm:%s342]
                %356 = vst [vmem:[%s352 + $0x8] sm:%s342] %v355
                %v357 = vld [vmem:[%s351 + $0x10] sm:%s342]
                %358 = vst [vmem:[%s352 + $0x10] sm:%s342] %v357
                %v359 = vld [vmem:[%s351 + $0x18] sm:%s342]
                %360 = vst [vmem:[%s352 + $0x18] sm:%s342] %v359
                %v361 = vld [vmem:[%s351 + $0x20] sm:%s342]
                %362 = vst [vmem:[%s352 + $0x20] sm:%s342] %v361
                %v363 = vld [vmem:[%s351 + $0x28] sm:%s342]
                %364 = vst [vmem:[%s352 + $0x28] sm:%s342] %v363
                %v365 = vld [vmem:[%s351 + $0x30] sm:%s342]
                %366 = vst [vmem:[%s352 + $0x30] sm:%s342] %v365
                %v367 = vld [vmem:[%s351 + $0x38] sm:%s342]
                %368 = vst [vmem:[%s352 + $0x38] sm:%s342] %v367
                %v369 = vld [vmem:[%s351 + $0x40] sm:%s342]
                %370 = vst [vmem:[%s352 + $0x40] sm:%s342] %v369
                %v371 = vld [vmem:[%s351 + $0x48] sm:%s342]
                %372 = vst [vmem:[%s352 + $0x48] sm:%s342] %v371
                %v373 = vld [vmem:[%s351 + $0x50] sm:%s342]
                %374 = vst [vmem:[%s352 + $0x50] sm:%s342] %v373
                %v375 = vld [vmem:[%s351 + $0x58] sm:%s342]
                %376 = vst [vmem:[%s352 + $0x58] sm:%s342] %v375
                %v377 = vld [vmem:[%s351 + $0x60] sm:%s342]
                %378 = vst [vmem:[%s352 + $0x60] sm:%s342] %v377
                %v379 = vld [vmem:[%s351 + $0x68] sm:%s342]
                %380 = vst [vmem:[%s352 + $0x68] sm:%s342] %v379
                %v381 = vld [vmem:[%s351 + $0x70] sm:%s342]
                %382 = vst [vmem:[%s352 + $0x70] sm:%s342] %v381
                %v383 = vld [vmem:[%s351 + $0x78] sm:%s342]
                %384 = vst [vmem:[%s352 + $0x78] sm:%s342] %v383
                %v385 = vld [vmem:[%s351 + $0xc8] sm:%s342]
                %386 = vst [vmem:[%s352 + $0x80] sm:%s342] %v385
                %v387 = vld [vmem:[%s351 + $0xd0] sm:%s342]
                %388 = vst [vmem:[%s352 + $0x88] sm:%s342] %v387
                %v389 = vld [vmem:[%s351 + $0xd8] sm:%s342]
                %390 = vst [vmem:[%s352 + $0x90] sm:%s342] %v389
                %v391 = vld [vmem:[%s351 + $0xe0] sm:%s342]
                %392 = vst [vmem:[%s352 + $0x98] sm:%s342] %v391
                %v393 = vld [vmem:[%s351 + $0xe8] sm:%s342]
                %394 = vst [vmem:[%s352 + $0xa0] sm:%s342] %v393
                %v395 = vld [vmem:[%s351 + $0xf0] sm:%s342]
                %396 = vst [vmem:[%s352 + $0xa8] sm:%s342] %v395
                %v397 = vld [vmem:[%s351 + $0xf8] sm:%s342]
                %398 = vst [vmem:[%s352 + $0xb0] sm:%s342] %v397
                %v399 = vld [vmem:[%s351 + $0x100] sm:%s342]
                %400 = vst [vmem:[%s352 + $0xb8] sm:%s342] %v399
                %v401 = vld [vmem:[%s351 + $0x108] sm:%s342]
                %402 = vst [vmem:[%s352 + $0xc0] sm:%s342] %v401
                %v403 = vld [vmem:[%s351 + $0x110] sm:%s342]
                %404 = vst [vmem:[%s352 + $0xc8] sm:%s342] %v403
                %v405 = vld [vmem:[%s351 + $0x118] sm:%s342]
                %406 = vst [vmem:[%s352 + $0xd0] sm:%s342] %v405
                %v407 = vld [vmem:[%s351 + $0x120] sm:%s342]
                %408 = vst [vmem:[%s352 + $0xd8] sm:%s342] %v407
                %v409 = vld [vmem:[%s351 + $0x128] sm:%s342]
                %410 = vst [vmem:[%s352 + $0xe0] sm:%s342] %v409
                %v411 = vld [vmem:[%s351 + $0x130] sm:%s342]
                %412 = vst [vmem:[%s352 + $0xe8] sm:%s342] %v411
                %v413 = vld [vmem:[%s351 + $0x138] sm:%s342]
                %414 = vst [vmem:[%s352 + $0xf0] sm:%s342] %v413
                %v415 = vld [vmem:[%s351 + $0x140] sm:%s342]
                %416 = vst [vmem:[%s352 + $0xf8] sm:%s342] %v415
                %v417 = vld [vmem:[%s351 + $0x190] sm:%s342]
                %418 = vst [vmem:[%s352 + $0x100] sm:%s342] %v417
                %v419 = vld [vmem:[%s351 + $0x198] sm:%s342]
                %420 = vst [vmem:[%s352 + $0x108] sm:%s342] %v419
                %v421 = vld [vmem:[%s351 + $0x1a0] sm:%s342]
                %422 = vst [vmem:[%s352 + $0x110] sm:%s342] %v421
                %v423 = vld [vmem:[%s351 + $0x1a8] sm:%s342]
                %424 = vst [vmem:[%s352 + $0x118] sm:%s342] %v423
                %v425 = vld [vmem:[%s351 + $0x1b0] sm:%s342]
                %426 = vst [vmem:[%s352 + $0x120] sm:%s342] %v425
                %v427 = vld [vmem:[%s351 + $0x1b8] sm:%s342]
                %428 = vst [vmem:[%s352 + $0x128] sm:%s342] %v427
                %v429 = vld [vmem:[%s351 + $0x1c0] sm:%s342]
                %430 = vst [vmem:[%s352 + $0x130] sm:%s342] %v429
                %v431 = vld [vmem:[%s351 + $0x1c8] sm:%s342]
                %432 = vst [vmem:[%s352 + $0x138] sm:%s342] %v431
                %v433 = vld [vmem:[%s351 + $0x1d0] sm:%s342]
                %434 = vst [vmem:[%s352 + $0x140] sm:%s342] %v433
                %v435 = vld [vmem:[%s351 + $0x1d8] sm:%s342]
                %436 = vst [vmem:[%s352 + $0x148] sm:%s342] %v435
                %v437 = vld [vmem:[%s351 + $0x1e0] sm:%s342]
                %438 = vst [vmem:[%s352 + $0x150] sm:%s342] %v437
                %v439 = vld [vmem:[%s351 + $0x1e8] sm:%s342]
                %440 = vst [vmem:[%s352 + $0x158] sm:%s342] %v439
                %v441 = vld [vmem:[%s351 + $0x1f0] sm:%s342]
                %442 = vst [vmem:[%s352 + $0x160] sm:%s342] %v441
                %v443 = vld [vmem:[%s351 + $0x1f8] sm:%s342]
                %444 = vst [vmem:[%s352 + $0x168] sm:%s342] %v443
                %v445 = vld [vmem:[%s351 + $0x200] sm:%s342]
                %446 = vst [vmem:[%s352 + $0x170] sm:%s342] %v445
                %v447 = vld [vmem:[%s351 + $0x208] sm:%s342]
                %448 = vst [vmem:[%s352 + $0x178] sm:%s342] %v447
                %s449 = sadd.s32 1, %s350
                %p450 = scmp.ge.s32.totalorder %s449, %s343
                %s451 = scalar_select %p450, 0, %s449
                %s452 = smul.u32 %s451, 128
                %s453 = smul.u32 %s451, 128
                %s454 = scalar_lea.vmem %s333, %s452
                %s455 = scalar_lea.vmem %s325, %s453 [#allocation5]
              $region65: #{update_block_3nf.1} parent=59 // loop_footer
                %s347 = sadd.s32 %s345, 1
              $region66: #{update_block_3nf.1} parent=59 // loop_footer_branch
                %344 = sbr.rel target = $region62
              $region67: #{update_block_3nf.1} parent=59 // loop_exit
                _
              %s456 = sshrl.u32 %s329, 4
              %s457 = sand.u32 %s329, 15
              %s458 = smul.u32 %s456, 16
              %s459 = smul.u32 8, %s458
              %s460 = scalar_lea.vmem %s333, %s459
              %s461 = smul.u32 8, %s458
              %s462 = scalar_lea.vmem %s325, %s461 [#allocation5]
              // While loop
              $region68: #{update_block_3nf.1} parent=59 // loop_pre_header
                _
              $region69: #{update_block_3nf.1} parent=59 // loop_header
                %s464 = sphi 0, %s466
                %p465 = scmp.ge.s32.totalorder %s464, %s457
                %s469 = sphi 0, %s480
                %s470 = sphi %s460, %s483
                %s471 = sphi %s462, %s484
              $region70: #{update_block_3nf.1} parent=59 // loop_header_branch
                %468 = sbr.rel (%p465) target = $region74
              $region71: #{update_block_3nf.1} parent=59 // loop_body
                %v472 = vld [vmem:[%s470] sm:%s342]
                %473 = vst [vmem:[%s471] sm:%s342] %v472
                %v474 = vld [vmem:[%s470 + $0xc8] sm:%s342]
                %475 = vst [vmem:[%s471 + $0x80] sm:%s342] %v474
                %v476 = vld [vmem:[%s470 + $0x190] sm:%s342]
                %477 = vst [vmem:[%s471 + $0x100] sm:%s342] %v476
                %s478 = sadd.s32 1, %s469
                %p479 = scmp.ge.s32.totalorder %s478, %s457
                %s480 = scalar_select %p479, 0, %s478
                %s481 = smul.u32 %s480, 8
                %s482 = smul.u32 %s480, 8
                %s483 = scalar_lea.vmem %s460, %s481
                %s484 = scalar_lea.vmem %s462, %s482 [#allocation5]
              $region72: #{update_block_3nf.1} parent=59 // loop_footer
                %s466 = sadd.s32 %s464, 1
              $region73: #{update_block_3nf.1} parent=59 // loop_footer_branch
                %463 = sbr.rel target = $region69
              $region74: #{update_block_3nf.1} parent=59 // loop_exit
                _
            $region60: #{update_block_3nf.1} parent=51 // pred_fallthru
              _
          $region52: #{update_block_3nf.1} parent=47 // pred_fallthru
            _
          %631 = vnop
        $region48: #{update_block_3nf.1} parent=39 // pred_fallthru
          _
      $region40: #{update_block_3nf.1} parent=5 // pred_fallthru
        _
      %p632 = scmp.le.s32.totalorder 1, %s25
      %p633 = scmp.lt.s32.totalorder %s25, 3
      %p634 = pnand %p632, %p633
      %p635 = pneg %p634
      // Predicated region
      $region97: #{update_block_3nf.1} parent=5 // pred_check
        _
      $region98: #{update_block_3nf.1} parent=5 // pred_check_branch
        %637 = sbr.rel (%p634) target = $region100
      $region99: #{update_block_3nf.1} parent=5 // pred_region
        %s638 = ssub.s32 %s25, 1
        %s639 = sand.u32 %s38, 1
        %s640 = scalar_lea.sflag [#allocation3], %s639
        %s641 = sand.u32 %s38, 1
        %s642 = smul.addr %s641, 128
        %s643 = scalar_lea.vmem [#allocation2], %s642
        // Predicated region
        $region101: #{update_block_3nf.1} parent=99 // pred_check
          %p644 = pneg %p51
        $region102: #{update_block_3nf.1} parent=99 // pred_check_branch
          %646 = sbr.rel (%p644) target = $region104
        $region103: #{update_block_3nf.1} parent=99 // pred_region
          %647 = dma.done %s640, 2048
        $region104: #{update_block_3nf.1} parent=99 // pred_fallthru
          _
        %s648 = sand.u32 %s64, 1
        %s649 = sand.u32 %s64, 1
        %s650 = smul.addr %s649, 384
        %s651 = scalar_lea.vmem [#allocation5], %s650
        // Predicated region
        $region105: #{update_block_3nf.1} parent=99 // pred_check
          %p652 = pneg %p77
        $region106: #{update_block_3nf.1} parent=99 // pred_check_branch
          %654 = sbr.rel (%p652) target = $region108
        $region107: #{update_block_3nf.1} parent=99 // pred_region
          _
        $region108: #{update_block_3nf.1} parent=99 // pred_fallthru
          _
        %s655 = sand.u32 %s38, 1
        %s656 = scalar_lea.sflag [#allocation3], %s655
        %s657 = sand.u32 %s38, 1
        %s658 = smul.addr %s657, 128
        %s659 = scalar_lea.vmem [#allocation2], %s658
        %p660 = pneg %p51
        %p661 = pneg %p48
        %s662 = sand.u32 %s64, 1
        %s663 = sand.u32 %s64, 1
        %s664 = smul.addr %s663, 384
        %s665 = scalar_lea.vmem [#allocation5], %s664
        %p666 = pneg %p77
        %p667 = pneg %p74
        %p668 = pneg %p98
        %p669 = pneg %p95
        %p670 = pneg %p119
        %p671 = pneg %p116
        %p672 = pneg %p140
        %p673 = pneg %p137
        %p674 = pneg %p161
        %p675 = pneg %p158
        %p676 = pneg %p182
        %p677 = pneg %p179
        %p678 = pneg %p203
        %p679 = pneg %p200
        %p680 = pneg %p229
        %p681 = pneg %p226
        %s682 = sand.u32 %s216, 1
        %s683 = scalar_lea.sflag [#allocation4], %s682
        %s684 = sand.u32 %s216, 1
        %s685 = smul.addr %s684, 128
        %s686 = scalar_lea.vmem [#allocation6], %s685
        %p687 = pneg %p255
        %p688 = pneg %p252
        %s689 = sand.u32 %s242, 1
        %s690 = scalar_lea.sflag [#allocation8], %s689
        %s691 = sand.u32 %s242, 1
        %s692 = smul.addr %s691, 384
        %s693 = scalar_lea.vmem [#allocation7], %s692
        %s694 = smul.u32 16, %s30
        %s695 = ssub.s32 25, %s694
        %p696 = scmp.lt.s32.totalorder %s695, 16
        %s697 = scalar_select %p696, %s695, 16
        %s698 = smul.u32 128, %s697
        %s699 = smul.u32 16, %s30
        %s700 = ssub.s32 25, %s699
        %p701 = scmp.lt.s32.totalorder %s700, 16
        %s702 = scalar_select %p701, %s700, 16
        %s703 = smul.u32 384, %s702
        %s704 = smul.u32 16, %s30
        %s705 = ssub.s32 25, %s704
        %p706 = scmp.lt.s32.totalorder %s705, 16
        %s707 = scalar_select %p706, %s705, 16
        %s708 = smul.u32 128, %s707
        %s709 = smul.u32 16, %s30
        %s710 = ssub.s32 25, %s709
        %p711 = scmp.lt.s32.totalorder %s710, 16
        %s712 = scalar_select %p711, %s710, 16
        %s713 = smul.u32 384, %s712
        %v714 = vld [vmem:[%s651] sm:$0xff]
        %v715 = vld [vmem:[%s651 + $0x8] sm:$0xff]
        %v716 = vld [vmem:[%s651 + $0x10] sm:$0xff]
        %v717 = vld [vmem:[%s651 + $0x18] sm:$0xff]
        %v718 = vld [vmem:[%s651 + $0x20] sm:$0xff]
        %v719 = vld [vmem:[%s651 + $0x28] sm:$0xff]
        %v720 = vld [vmem:[%s651 + $0x30] sm:$0xff]
        %v721 = vld [vmem:[%s651 + $0x38] sm:$0xff]
        %v722 = vld [vmem:[%s651 + $0x40] sm:$0xff]
        %v723 = vld [vmem:[%s651 + $0x48] sm:$0xff]
        %v724 = vld [vmem:[%s651 + $0x50] sm:$0xff]
        %v725 = vld [vmem:[%s651 + $0x58] sm:$0xff]
        %v726 = vld [vmem:[%s651 + $0x60] sm:$0xff]
        %v727 = vld [vmem:[%s651 + $0x68] sm:$0xff]
        %v728 = vld [vmem:[%s651 + $0x70] sm:$0xff]
        %v729 = vld [vmem:[%s651 + $0x78] sm:$0xff]
        %v730 = vld [vmem:[%s651 + $0x80] sm:$0xff]
        %v731 = vld [vmem:[%s651 + $0x88] sm:$0xff]
        %v732 = vld [vmem:[%s651 + $0x90] sm:$0xff]
        %v733 = vld [vmem:[%s651 + $0x98] sm:$0xff]
        %v734 = vld [vmem:[%s651 + $0xa0] sm:$0xff]
        %v735 = vld [vmem:[%s651 + $0xa8] sm:$0xff]
        %v736 = vld [vmem:[%s651 + $0xb0] sm:$0xff]
        %v737 = vld [vmem:[%s651 + $0xb8] sm:$0xff]
        %v738 = vld [vmem:[%s651 + $0xc0] sm:$0xff]
        %v739 = vld [vmem:[%s651 + $0xc8] sm:$0xff]
        %v740 = vld [vmem:[%s651 + $0xd0] sm:$0xff]
        %v741 = vld [vmem:[%s651 + $0xd8] sm:$0xff]
        %v742 = vld [vmem:[%s651 + $0xe0] sm:$0xff]
        %v743 = vld [vmem:[%s651 + $0xe8] sm:$0xff]
        %v744 = vld [vmem:[%s651 + $0xf0] sm:$0xff]
        %v745 = vld [vmem:[%s651 + $0xf8] sm:$0xff]
        %v746 = vld [vmem:[%s651 + $0x100] sm:$0xff]
        %v747 = vld [vmem:[%s651 + $0x108] sm:$0xff]
        %v748 = vld [vmem:[%s651 + $0x110] sm:$0xff]
        %v749 = vld [vmem:[%s651 + $0x118] sm:$0xff]
        %v750 = vld [vmem:[%s651 + $0x120] sm:$0xff]
        %v751 = vld [vmem:[%s651 + $0x128] sm:$0xff]
        %v752 = vld [vmem:[%s651 + $0x130] sm:$0xff]
        %v753 = vld [vmem:[%s651 + $0x138] sm:$0xff]
        %v754 = vld [vmem:[%s651 + $0x140] sm:$0xff]
        %v755 = vld [vmem:[%s651 + $0x148] sm:$0xff]
        %v756 = vld [vmem:[%s651 + $0x150] sm:$0xff]
        %v757 = vld [vmem:[%s651 + $0x158] sm:$0xff]
        %v758 = vld [vmem:[%s651 + $0x160] sm:$0xff]
        %v759 = vld [vmem:[%s651 + $0x168] sm:$0xff]
        %v760 = vld [vmem:[%s651 + $0x170] sm:$0xff]
        %v761 = vld [vmem:[%s651 + $0x178] sm:$0xff]
        %v762 = vld [vmem:[%s2] sm:$0xff]
        %v763 = vld [vmem:[%s2 + $0x8] sm:$0xff]
        %v764 = vld [vmem:[%s2 + $0x10] sm:$0xff]
        %v765 = vld [vmem:[%s2 + $0x18] sm:$0xff]
        %v766 = vld [vmem:[%s2 + $0x20] sm:$0xff]
        %v767 = vld [vmem:[%s2 + $0x28] sm:$0xff]
        %v768 = vld [vmem:[%s2 + $0x30] sm:$0xff]
        %v769 = vld [vmem:[%s2 + $0x38] sm:$0xff]
        %v770 = vld [vmem:[%s2 + $0x40] sm:$0xff]
        %v771 = vld [vmem:[%s2 + $0x48] sm:$0xff]
        %v772 = vld [vmem:[%s2 + $0x50] sm:$0xff]
        %v773 = vld [vmem:[%s2 + $0x58] sm:$0xff]
        %v774 = vld [vmem:[%s2 + $0x60] sm:$0xff]
        %v775 = vld [vmem:[%s2 + $0x68] sm:$0xff]
        %v776 = vld [vmem:[%s2 + $0x70] sm:$0xff]
        %v777 = vld [vmem:[%s2 + $0x78] sm:$0xff]
        %v778 = vld [vmem:[%s2 + $0x80] sm:$0xff]
        %v779 = vld [vmem:[%s2 + $0x88] sm:$0xff]
        %v780 = vld [vmem:[%s2 + $0x90] sm:$0xff]
        %v781 = vld [vmem:[%s2 + $0x98] sm:$0xff]
        %v782 = vld [vmem:[%s2 + $0xa0] sm:$0xff]
        %v783 = vld [vmem:[%s2 + $0xa8] sm:$0xff]
        %v784 = vld [vmem:[%s2 + $0xb0] sm:$0xff]
        %v785 = vld [vmem:[%s2 + $0xb8] sm:$0xff]
        %v786 = vld [vmem:[%s2 + $0xc0] sm:$0xff]
        %v787 = vld [vmem:[%s2 + $0xc8] sm:$0xff]
        %v788 = vld [vmem:[%s2 + $0xd0] sm:$0xff]
        %v789 = vld [vmem:[%s2 + $0xd8] sm:$0xff]
        %v790 = vld [vmem:[%s2 + $0xe0] sm:$0xff]
        %v791 = vld [vmem:[%s2 + $0xe8] sm:$0xff]
        %v792 = vld [vmem:[%s2 + $0xf0] sm:$0xff]
        %v793 = vld [vmem:[%s2 + $0xf8] sm:$0xff]
        %794 = vmatprep.subr.mxu0 %v793
        %795 = vmatpush1.msra.mxu0 %v792
        %796 = vmatprep.subr.mxu0 %v791
        %797 = vmatpush1.msra.mxu0 %v790
        %798 = vmatprep.subr.mxu0 %v789
        %799 = vmatpush1.msra.mxu0 %v788
        %800 = vmatprep.subr.mxu0 %v787
        %801 = vmatpush1.msra.mxu0 %v786
        %802 = vmatprep.subr.mxu0 %v785
        %803 = vmatpush1.msra.mxu0 %v784
        %804 = vmatprep.subr.mxu0 %v783
        %805 = vmatpush1.msra.mxu0 %v782
        %806 = vmatprep.subr.mxu0 %v781
        %807 = vmatpush1.msra.mxu0 %v780
        %808 = vmatprep.subr.mxu0 %v779
        %809 = vmatpush1.msra.mxu0 %v778
        %810 = vmatprep.subr.mxu0 %v777
        %811 = vmatpush1.msra.mxu0 %v776
        %812 = vmatprep.subr.mxu0 %v775
        %813 = vmatpush1.msra.mxu0 %v774
        %814 = vmatprep.subr.mxu0 %v773
        %815 = vmatpush1.msra.mxu0 %v772
        %816 = vmatprep.subr.mxu0 %v771
        %817 = vmatpush1.msra.mxu0 %v770
        %818 = vmatprep.subr.mxu0 %v769
        %819 = vmatpush1.msra.mxu0 %v768
        %820 = vmatprep.subr.mxu0 %v767
        %821 = vmatpush1.msra.mxu0 %v766
        %822 = vmatprep.subr.mxu0 %v765
        %823 = vmatpush1.msra.mxu0 %v764
        %824 = vmatprep.subr.mxu0 %v763
        %825 = vmatpush1.msra.mxu0 %v762
        %826 = vmatprep.subr.mxu0 0.0
        %827 = vmatpush2.msra.mxu0 0.0
        %828 = vmatprep.subr.mxu0 0.0
        %829 = vmatpush2.msra.mxu0 0.0
        %830 = vmatprep.subr.mxu0 0.0
        %831 = vmatpush2.msra.mxu0 0.0
        %832 = vmatprep.subr.mxu0 0.0
        %833 = vmatpush2.msra.mxu0 0.0
        %834 = vmatprep.subr.mxu0 0.0
        %835 = vmatpush2.msra.mxu0 0.0
        %836 = vmatprep.subr.mxu0 0.0
        %837 = vmatpush2.msra.mxu0 0.0
        %838 = vmatprep.subr.mxu0 0.0
        %839 = vmatpush2.msra.mxu0 0.0
        %840 = vmatprep.subr.mxu0 0.0
        %841 = vmatpush2.msra.mxu0 0.0
        %842 = vmatprep.subr.mxu0 0.0
        %843 = vmatpush2.msra.mxu0 0.0
        %844 = vmatprep.subr.mxu0 0.0
        %845 = vmatpush2.msra.mxu0 0.0
        %846 = vmatprep.subr.mxu0 0.0
        %847 = vmatpush2.msra.mxu0 0.0
        %848 = vmatprep.subr.mxu0 0.0
        %849 = vmatpush2.msra.mxu0 0.0
        %850 = vmatprep.subr.mxu0 0.0
        %851 = vmatpush2.msra.mxu0 0.0
        %852 = vmatprep.subr.mxu0 0.0
        %853 = vmatpush2.msra.mxu0 0.0
        %854 = vmatprep.subr.mxu0 0.0
        %855 = vmatpush2.msra.mxu0 0.0
        %856 = vmatprep.subr.mxu0 0.0
        %857 = vmatpush2.msra.mxu0 0.0
        %858 = vmatprep.mubr.f32.mxu0 0.0
        %859 = vmatmul.mubr.f32.gmra.mxu0 %v714
        %v860 = vpop.f32.mrf.mxu0
        %v861 = vadd.f32 0.0, %v860
        %v862 = vpop.f32.mrf.mxu0
        %v863 = vadd.f32 0.0, %v862
        %864 = vmatprep.mubr.f32.mxu0 0.0
        %865 = vmatmul.mubr.f32.gmra.mxu0 %v715
        %v866 = vpop.f32.mrf.mxu0
        %v867 = vadd.f32 0.0, %v866
        %v868 = vpop.f32.mrf.mxu0
        %v869 = vadd.f32 0.0, %v868
        %870 = vmatprep.mubr.f32.mxu0 0.0
        %871 = vmatmul.mubr.f32.gmra.mxu0 %v716
        %v872 = vpop.f32.mrf.mxu0
        %v873 = vadd.f32 0.0, %v872
        %v874 = vpop.f32.mrf.mxu0
        %v875 = vadd.f32 0.0, %v874
        %876 = vmatprep.mubr.f32.mxu0 0.0
        %877 = vmatmul.mubr.f32.gmra.mxu0 %v717
        %v878 = vpop.f32.mrf.mxu0
        %v879 = vadd.f32 0.0, %v878
        %v880 = vpop.f32.mrf.mxu0
        %v881 = vadd.f32 0.0, %v880
        %882 = vmatprep.mubr.f32.mxu0 0.0
        %883 = vmatmul.mubr.f32.gmra.mxu0 %v718
        %v884 = vpop.f32.mrf.mxu0
        %v885 = vadd.f32 0.0, %v884
        %v886 = vpop.f32.mrf.mxu0
        %v887 = vadd.f32 0.0, %v886
        %888 = vmatprep.mubr.f32.mxu0 0.0
        %889 = vmatmul.mubr.f32.gmra.mxu0 %v719
        %v890 = vpop.f32.mrf.mxu0
        %v891 = vadd.f32 0.0, %v890
        %v892 = vpop.f32.mrf.mxu0
        %v893 = vadd.f32 0.0, %v892
        %894 = vmatprep.mubr.f32.mxu0 0.0
        %895 = vmatmul.mubr.f32.gmra.mxu0 %v720
        %v896 = vpop.f32.mrf.mxu0
        %v897 = vadd.f32 0.0, %v896
        %v898 = vpop.f32.mrf.mxu0
        %v899 = vadd.f32 0.0, %v898
        %900 = vmatprep.mubr.f32.mxu0 0.0
        %901 = vmatmul.mubr.f32.gmra.mxu0 %v721
        %v902 = vpop.f32.mrf.mxu0
        %v903 = vadd.f32 0.0, %v902
        %v904 = vpop.f32.mrf.mxu0
        %v905 = vadd.f32 0.0, %v904
        %906 = vmatprep.mubr.f32.mxu0 0.0
        %907 = vmatmul.mubr.f32.gmra.mxu0 %v722
        %v908 = vpop.f32.mrf.mxu0
        %v909 = vadd.f32 0.0, %v908
        %v910 = vpop.f32.mrf.mxu0
        %v911 = vadd.f32 0.0, %v910
        %912 = vmatprep.mubr.f32.mxu0 0.0
        %913 = vmatmul.mubr.f32.gmra.mxu0 %v723
        %v914 = vpop.f32.mrf.mxu0
        %v915 = vadd.f32 0.0, %v914
        %v916 = vpop.f32.mrf.mxu0
        %v917 = vadd.f32 0.0, %v916
        %918 = vmatprep.mubr.f32.mxu0 0.0
        %919 = vmatmul.mubr.f32.gmra.mxu0 %v724
        %v920 = vpop.f32.mrf.mxu0
        %v921 = vadd.f32 0.0, %v920
        %v922 = vpop.f32.mrf.mxu0
        %v923 = vadd.f32 0.0, %v922
        %924 = vmatprep.mubr.f32.mxu0 0.0
        %925 = vmatmul.mubr.f32.gmra.mxu0 %v725
        %v926 = vpop.f32.mrf.mxu0
        %v927 = vadd.f32 0.0, %v926
        %v928 = vpop.f32.mrf.mxu0
        %v929 = vadd.f32 0.0, %v928
        %930 = vmatprep.mubr.f32.mxu0 0.0
        %931 = vmatmul.mubr.f32.gmra.mxu0 %v726
        %v932 = vpop.f32.mrf.mxu0
        %v933 = vadd.f32 0.0, %v932
        %v934 = vpop.f32.mrf.mxu0
        %v935 = vadd.f32 0.0, %v934
        %936 = vmatprep.mubr.f32.mxu0 0.0
        %937 = vmatmul.mubr.f32.gmra.mxu0 %v727
        %v938 = vpop.f32.mrf.mxu0
        %v939 = vadd.f32 0.0, %v938
        %v940 = vpop.f32.mrf.mxu0
        %v941 = vadd.f32 0.0, %v940
        %942 = vmatprep.mubr.f32.mxu0 0.0
        %943 = vmatmul.mubr.f32.gmra.mxu0 %v728
        %v944 = vpop.f32.mrf.mxu0
        %v945 = vadd.f32 0.0, %v944
        %v946 = vpop.f32.mrf.mxu0
        %v947 = vadd.f32 0.0, %v946
        %948 = vmatprep.mubr.f32.mxu0 0.0
        %949 = vmatmul.mubr.f32.gmra.mxu0 %v729
        %v950 = vpop.f32.mrf.mxu0
        %v951 = vadd.f32 0.0, %v950
        %v952 = vpop.f32.mrf.mxu0
        %v953 = vadd.f32 0.0, %v952
        %954 = vmatprep.mubr.f32.mxu0 0.0
        %955 = vmatmul.mubr.f32.gmra.mxu0 %v730
        %v956 = vpop.f32.mrf.mxu0
        %v957 = vadd.f32 0.0, %v956
        %v958 = vpop.f32.mrf.mxu0
        %v959 = vadd.f32 0.0, %v958
        %960 = vmatprep.mubr.f32.mxu0 0.0
        %961 = vmatmul.mubr.f32.gmra.mxu0 %v731
        %v962 = vpop.f32.mrf.mxu0
        %v963 = vadd.f32 0.0, %v962
        %v964 = vpop.f32.mrf.mxu0
        %v965 = vadd.f32 0.0, %v964
        %966 = vmatprep.mubr.f32.mxu0 0.0
        %967 = vmatmul.mubr.f32.gmra.mxu0 %v732
        %v968 = vpop.f32.mrf.mxu0
        %v969 = vadd.f32 0.0, %v968
        %v970 = vpop.f32.mrf.mxu0
        %v971 = vadd.f32 0.0, %v970
        %972 = vmatprep.mubr.f32.mxu0 0.0
        %973 = vmatmul.mubr.f32.gmra.mxu0 %v733
        %v974 = vpop.f32.mrf.mxu0
        %v975 = vadd.f32 0.0, %v974
        %v976 = vpop.f32.mrf.mxu0
        %v977 = vadd.f32 0.0, %v976
        %978 = vmatprep.mubr.f32.mxu0 0.0
        %979 = vmatmul.mubr.f32.gmra.mxu0 %v734
        %v980 = vpop.f32.mrf.mxu0
        %v981 = vadd.f32 0.0, %v980
        %v982 = vpop.f32.mrf.mxu0
        %v983 = vadd.f32 0.0, %v982
        %984 = vmatprep.mubr.f32.mxu0 0.0
        %985 = vmatmul.mubr.f32.gmra.mxu0 %v735
        %v986 = vpop.f32.mrf.mxu0
        %v987 = vadd.f32 0.0, %v986
        %v988 = vpop.f32.mrf.mxu0
        %v989 = vadd.f32 0.0, %v988
        %990 = vmatprep.mubr.f32.mxu0 0.0
        %991 = vmatmul.mubr.f32.gmra.mxu0 %v736
        %v992 = vpop.f32.mrf.mxu0
        %v993 = vadd.f32 0.0, %v992
        %v994 = vpop.f32.mrf.mxu0
        %v995 = vadd.f32 0.0, %v994
        %996 = vmatprep.mubr.f32.mxu0 0.0
        %997 = vmatmul.mubr.f32.gmra.mxu0 %v737
        %v998 = vpop.f32.mrf.mxu0
        %v999 = vadd.f32 0.0, %v998
        %v1000 = vpop.f32.mrf.mxu0
        %v1001 = vadd.f32 0.0, %v1000
        %1002 = vmatprep.mubr.f32.mxu0 0.0
        %1003 = vmatmul.mubr.f32.gmra.mxu0 %v738
        %v1004 = vpop.f32.mrf.mxu0
        %v1005 = vadd.f32 0.0, %v1004
        %v1006 = vpop.f32.mrf.mxu0
        %v1007 = vadd.f32 0.0, %v1006
        %1008 = vmatprep.mubr.f32.mxu0 0.0
        %1009 = vmatmul.mubr.f32.gmra.mxu0 %v739
        %v1010 = vpop.f32.mrf.mxu0
        %v1011 = vadd.f32 0.0, %v1010
        %v1012 = vpop.f32.mrf.mxu0
        %v1013 = vadd.f32 0.0, %v1012
        %1014 = vmatprep.mubr.f32.mxu0 0.0
        %1015 = vmatmul.mubr.f32.gmra.mxu0 %v740
        %v1016 = vpop.f32.mrf.mxu0
        %v1017 = vadd.f32 0.0, %v1016
        %v1018 = vpop.f32.mrf.mxu0
        %v1019 = vadd.f32 0.0, %v1018
        %1020 = vmatprep.mubr.f32.mxu0 0.0
        %1021 = vmatmul.mubr.f32.gmra.mxu0 %v741
        %v1022 = vpop.f32.mrf.mxu0
        %v1023 = vadd.f32 0.0, %v1022
        %v1024 = vpop.f32.mrf.mxu0
        %v1025 = vadd.f32 0.0, %v1024
        %1026 = vmatprep.mubr.f32.mxu0 0.0
        %1027 = vmatmul.mubr.f32.gmra.mxu0 %v742
        %v1028 = vpop.f32.mrf.mxu0
        %v1029 = vadd.f32 0.0, %v1028
        %v1030 = vpop.f32.mrf.mxu0
        %v1031 = vadd.f32 0.0, %v1030
        %1032 = vmatprep.mubr.f32.mxu0 0.0
        %1033 = vmatmul.mubr.f32.gmra.mxu0 %v743
        %v1034 = vpop.f32.mrf.mxu0
        %v1035 = vadd.f32 0.0, %v1034
        %v1036 = vpop.f32.mrf.mxu0
        %v1037 = vadd.f32 0.0, %v1036
        %1038 = vmatprep.mubr.f32.mxu0 0.0
        %1039 = vmatmul.mubr.f32.gmra.mxu0 %v744
        %v1040 = vpop.f32.mrf.mxu0
        %v1041 = vadd.f32 0.0, %v1040
        %v1042 = vpop.f32.mrf.mxu0
        %v1043 = vadd.f32 0.0, %v1042
        %1044 = vmatprep.mubr.f32.mxu0 0.0
        %1045 = vmatmul.mubr.f32.gmra.mxu0 %v745
        %v1046 = vpop.f32.mrf.mxu0
        %v1047 = vadd.f32 0.0, %v1046
        %v1048 = vpop.f32.mrf.mxu0
        %v1049 = vadd.f32 0.0, %v1048
        %1050 = vmatprep.mubr.f32.mxu0 0.0
        %1051 = vmatmul.mubr.f32.gmra.mxu0 %v746
        %v1052 = vpop.f32.mrf.mxu0
        %v1053 = vadd.f32 0.0, %v1052
        %v1054 = vpop.f32.mrf.mxu0
        %v1055 = vadd.f32 0.0, %v1054
        %1056 = vmatprep.mubr.f32.mxu0 0.0
        %1057 = vmatmul.mubr.f32.gmra.mxu0 %v747
        %v1058 = vpop.f32.mrf.mxu0
        %v1059 = vadd.f32 0.0, %v1058
        %v1060 = vpop.f32.mrf.mxu0
        %v1061 = vadd.f32 0.0, %v1060
        %1062 = vmatprep.mubr.f32.mxu0 0.0
        %1063 = vmatmul.mubr.f32.gmra.mxu0 %v748
        %v1064 = vpop.f32.mrf.mxu0
        %v1065 = vadd.f32 0.0, %v1064
        %v1066 = vpop.f32.mrf.mxu0
        %v1067 = vadd.f32 0.0, %v1066
        %1068 = vmatprep.mubr.f32.mxu0 0.0
        %1069 = vmatmul.mubr.f32.gmra.mxu0 %v749
        %v1070 = vpop.f32.mrf.mxu0
        %v1071 = vadd.f32 0.0, %v1070
        %v1072 = vpop.f32.mrf.mxu0
        %v1073 = vadd.f32 0.0, %v1072
        %1074 = vmatprep.mubr.f32.mxu0 0.0
        %1075 = vmatmul.mubr.f32.gmra.mxu0 %v750
        %v1076 = vpop.f32.mrf.mxu0
        %v1077 = vadd.f32 0.0, %v1076
        %v1078 = vpop.f32.mrf.mxu0
        %v1079 = vadd.f32 0.0, %v1078
        %1080 = vmatprep.mubr.f32.mxu0 0.0
        %1081 = vmatmul.mubr.f32.gmra.mxu0 %v751
        %v1082 = vpop.f32.mrf.mxu0
        %v1083 = vadd.f32 0.0, %v1082
        %v1084 = vpop.f32.mrf.mxu0
        %v1085 = vadd.f32 0.0, %v1084
        %1086 = vmatprep.mubr.f32.mxu0 0.0
        %1087 = vmatmul.mubr.f32.gmra.mxu0 %v752
        %v1088 = vpop.f32.mrf.mxu0
        %v1089 = vadd.f32 0.0, %v1088
        %v1090 = vpop.f32.mrf.mxu0
        %v1091 = vadd.f32 0.0, %v1090
        %1092 = vmatprep.mubr.f32.mxu0 0.0
        %1093 = vmatmul.mubr.f32.gmra.mxu0 %v753
        %v1094 = vpop.f32.mrf.mxu0
        %v1095 = vadd.f32 0.0, %v1094
        %v1096 = vpop.f32.mrf.mxu0
        %v1097 = vadd.f32 0.0, %v1096
        %1098 = vmatprep.mubr.f32.mxu0 0.0
        %1099 = vmatmul.mubr.f32.gmra.mxu0 %v754
        %v1100 = vpop.f32.mrf.mxu0
        %v1101 = vadd.f32 0.0, %v1100
        %v1102 = vpop.f32.mrf.mxu0
        %v1103 = vadd.f32 0.0, %v1102
        %1104 = vmatprep.mubr.f32.mxu0 0.0
        %1105 = vmatmul.mubr.f32.gmra.mxu0 %v755
        %v1106 = vpop.f32.mrf.mxu0
        %v1107 = vadd.f32 0.0, %v1106
        %v1108 = vpop.f32.mrf.mxu0
        %v1109 = vadd.f32 0.0, %v1108
        %1110 = vmatprep.mubr.f32.mxu0 0.0
        %1111 = vmatmul.mubr.f32.gmra.mxu0 %v756
        %v1112 = vpop.f32.mrf.mxu0
        %v1113 = vadd.f32 0.0, %v1112
        %v1114 = vpop.f32.mrf.mxu0
        %v1115 = vadd.f32 0.0, %v1114
        %1116 = vmatprep.mubr.f32.mxu0 0.0
        %1117 = vmatmul.mubr.f32.gmra.mxu0 %v757
        %v1118 = vpop.f32.mrf.mxu0
        %v1119 = vadd.f32 0.0, %v1118
        %v1120 = vpop.f32.mrf.mxu0
        %v1121 = vadd.f32 0.0, %v1120
        %1122 = vmatprep.mubr.f32.mxu0 0.0
        %1123 = vmatmul.mubr.f32.gmra.mxu0 %v758
        %v1124 = vpop.f32.mrf.mxu0
        %v1125 = vadd.f32 0.0, %v1124
        %v1126 = vpop.f32.mrf.mxu0
        %v1127 = vadd.f32 0.0, %v1126
        %1128 = vmatprep.mubr.f32.mxu0 0.0
        %1129 = vmatmul.mubr.f32.gmra.mxu0 %v759
        %v1130 = vpop.f32.mrf.mxu0
        %v1131 = vadd.f32 0.0, %v1130
        %v1132 = vpop.f32.mrf.mxu0
        %v1133 = vadd.f32 0.0, %v1132
        %1134 = vmatprep.mubr.f32.mxu0 0.0
        %1135 = vmatmul.mubr.f32.gmra.mxu0 %v760
        %v1136 = vpop.f32.mrf.mxu0
        %v1137 = vadd.f32 0.0, %v1136
        %v1138 = vpop.f32.mrf.mxu0
        %v1139 = vadd.f32 0.0, %v1138
        %1140 = vmatprep.mubr.f32.mxu0 0.0
        %1141 = vmatmul.mubr.f32.gmra.mxu0 %v761
        %v1142 = vpop.f32.mrf.mxu0
        %v1143 = vadd.f32 0.0, %v1142
        %v1144 = vpop.f32.mrf.mxu0
        %v1145 = vadd.f32 0.0, %v1144
        %1146 = vdwg.mxu0
        %v1147 = vmul.f32 %v863, %v863
        %v1148 = vmul.f32 %v869, %v869
        %v1149 = vmul.f32 %v875, %v875
        %v1150 = vmul.f32 %v881, %v881
        %v1151 = vmul.f32 %v887, %v887
        %v1152 = vmul.f32 %v893, %v893
        %v1153 = vmul.f32 %v899, %v899
        %v1154 = vmul.f32 %v905, %v905
        %v1155 = vmul.f32 %v911, %v911
        %v1156 = vmul.f32 %v917, %v917
        %v1157 = vmul.f32 %v923, %v923
        %v1158 = vmul.f32 %v929, %v929
        %v1159 = vmul.f32 %v935, %v935
        %v1160 = vmul.f32 %v941, %v941
        %v1161 = vmul.f32 %v947, %v947
        %v1162 = vmul.f32 %v953, %v953
        %v1163 = vmul.f32 %v959, %v959
        %v1164 = vmul.f32 %v965, %v965
        %v1165 = vmul.f32 %v971, %v971
        %v1166 = vmul.f32 %v977, %v977
        %v1167 = vmul.f32 %v983, %v983
        %v1168 = vmul.f32 %v989, %v989
        %v1169 = vmul.f32 %v995, %v995
        %v1170 = vmul.f32 %v1001, %v1001
        %v1171 = vmul.f32 %v1007, %v1007
        %v1172 = vmul.f32 %v1013, %v1013
        %v1173 = vmul.f32 %v1019, %v1019
        %v1174 = vmul.f32 %v1025, %v1025
        %v1175 = vmul.f32 %v1031, %v1031
        %v1176 = vmul.f32 %v1037, %v1037
        %v1177 = vmul.f32 %v1043, %v1043
        %v1178 = vmul.f32 %v1049, %v1049
        %v1179 = vmul.f32 %v1055, %v1055
        %v1180 = vmul.f32 %v1061, %v1061
        %v1181 = vmul.f32 %v1067, %v1067
        %v1182 = vmul.f32 %v1073, %v1073
        %v1183 = vmul.f32 %v1079, %v1079
        %v1184 = vmul.f32 %v1085, %v1085
        %v1185 = vmul.f32 %v1091, %v1091
        %v1186 = vmul.f32 %v1097, %v1097
        %v1187 = vmul.f32 %v1103, %v1103
        %v1188 = vmul.f32 %v1109, %v1109
        %v1189 = vmul.f32 %v1115, %v1115
        %v1190 = vmul.f32 %v1121, %v1121
        %v1191 = vmul.f32 %v1127, %v1127
        %v1192 = vmul.f32 %v1133, %v1133
        %v1193 = vmul.f32 %v1139, %v1139
        %v1194 = vmul.f32 %v1145, %v1145
        %v1195 = vadd.f32 %v1147, 1e-15
        %v1196 = vadd.f32 %v1148, 1e-15
        %v1197 = vadd.f32 %v1149, 1e-15
        %v1198 = vadd.f32 %v1150, 1e-15
        %v1199 = vadd.f32 %v1151, 1e-15
        %v1200 = vadd.f32 %v1152, 1e-15
        %v1201 = vadd.f32 %v1153, 1e-15
        %v1202 = vadd.f32 %v1154, 1e-15
        %v1203 = vadd.f32 %v1155, 1e-15
        %v1204 = vadd.f32 %v1156, 1e-15
        %v1205 = vadd.f32 %v1157, 1e-15
        %v1206 = vadd.f32 %v1158, 1e-15
        %v1207 = vadd.f32 %v1159, 1e-15
        %v1208 = vadd.f32 %v1160, 1e-15
        %v1209 = vadd.f32 %v1161, 1e-15
        %v1210 = vadd.f32 %v1162, 1e-15
        %v1211 = vadd.f32 %v1163, 1e-15
        %v1212 = vadd.f32 %v1164, 1e-15
        %v1213 = vadd.f32 %v1165, 1e-15
        %v1214 = vadd.f32 %v1166, 1e-15
        %v1215 = vadd.f32 %v1167, 1e-15
        %v1216 = vadd.f32 %v1168, 1e-15
        %v1217 = vadd.f32 %v1169, 1e-15
        %v1218 = vadd.f32 %v1170, 1e-15
        %v1219 = vadd.f32 %v1171, 1e-15
        %v1220 = vadd.f32 %v1172, 1e-15
        %v1221 = vadd.f32 %v1173, 1e-15
        %v1222 = vadd.f32 %v1174, 1e-15
        %v1223 = vadd.f32 %v1175, 1e-15
        %v1224 = vadd.f32 %v1176, 1e-15
        %v1225 = vadd.f32 %v1177, 1e-15
        %v1226 = vadd.f32 %v1178, 1e-15
        %v1227 = vadd.f32 %v1179, 1e-15
        %v1228 = vadd.f32 %v1180, 1e-15
        %v1229 = vadd.f32 %v1181, 1e-15
        %v1230 = vadd.f32 %v1182, 1e-15
        %v1231 = vadd.f32 %v1183, 1e-15
        %v1232 = vadd.f32 %v1184, 1e-15
        %v1233 = vadd.f32 %v1185, 1e-15
        %v1234 = vadd.f32 %v1186, 1e-15
        %v1235 = vadd.f32 %v1187, 1e-15
        %v1236 = vadd.f32 %v1188, 1e-15
        %v1237 = vadd.f32 %v1189, 1e-15
        %v1238 = vadd.f32 %v1190, 1e-15
        %v1239 = vadd.f32 %v1191, 1e-15
        %v1240 = vadd.f32 %v1192, 1e-15
        %v1241 = vadd.f32 %v1193, 1e-15
        %v1242 = vadd.f32 %v1194, 1e-15
        %v1243 = vadd.f32 %v1195, %v1211
        %v1244 = vadd.f32 %v1196, %v1212
        %v1245 = vadd.f32 %v1197, %v1213
        %v1246 = vadd.f32 %v1198, %v1214
        %v1247 = vadd.f32 %v1199, %v1215
        %v1248 = vadd.f32 %v1200, %v1216
        %v1249 = vadd.f32 %v1201, %v1217
        %v1250 = vadd.f32 %v1202, %v1218
        %v1251 = vadd.f32 %v1203, %v1219
        %v1252 = vadd.f32 %v1204, %v1220
        %v1253 = vadd.f32 %v1205, %v1221
        %v1254 = vadd.f32 %v1206, %v1222
        %v1255 = vadd.f32 %v1207, %v1223
        %v1256 = vadd.f32 %v1208, %v1224
        %v1257 = vadd.f32 %v1209, %v1225
        %v1258 = vadd.f32 %v1210, %v1226
        %v1259 = vadd.f32 %v1243, %v1227
        %v1260 = vadd.f32 %v1244, %v1228
        %v1261 = vadd.f32 %v1245, %v1229
        %v1262 = vadd.f32 %v1246, %v1230
        %v1263 = vadd.f32 %v1247, %v1231
        %v1264 = vadd.f32 %v1248, %v1232
        %v1265 = vadd.f32 %v1249, %v1233
        %v1266 = vadd.f32 %v1250, %v1234
        %v1267 = vadd.f32 %v1251, %v1235
        %v1268 = vadd.f32 %v1252, %v1236
        %v1269 = vadd.f32 %v1253, %v1237
        %v1270 = vadd.f32 %v1254, %v1238
        %v1271 = vadd.f32 %v1255, %v1239
        %v1272 = vadd.f32 %v1256, %v1240
        %v1273 = vadd.f32 %v1257, %v1241
        %v1274 = vadd.f32 %v1258, %v1242
        %v1275 = vrsqrt.pop %v1259
        %v1276 = vmul.f32 %v1259, %v1275
        %vm1277 = vcmp.eq.f32.partialorder %v1259, inf
        %v1278 = vsel %vm1277, %v1259, %v1276
        %vm1279 = vcmp.eq.f32.partialorder %v1259, 0.0
        %v1280 = vand.u32 %v1259, 2147483648
        %v1281 = vsel %vm1279, %v1280, %v1278
        %v1282 = vrsqrt.pop %v1260
        %v1283 = vmul.f32 %v1260, %v1282
        %vm1284 = vcmp.eq.f32.partialorder %v1260, inf
        %v1285 = vsel %vm1284, %v1260, %v1283
        %vm1286 = vcmp.eq.f32.partialorder %v1260, 0.0
        %v1287 = vand.u32 %v1260, 2147483648
        %v1288 = vsel %vm1286, %v1287, %v1285
        %v1289 = vrsqrt.pop %v1261
        %v1290 = vmul.f32 %v1261, %v1289
        %vm1291 = vcmp.eq.f32.partialorder %v1261, inf
        %v1292 = vsel %vm1291, %v1261, %v1290
        %vm1293 = vcmp.eq.f32.partialorder %v1261, 0.0
        %v1294 = vand.u32 %v1261, 2147483648
        %v1295 = vsel %vm1293, %v1294, %v1292
        %v1296 = vrsqrt.pop %v1262
        %v1297 = vmul.f32 %v1262, %v1296
        %vm1298 = vcmp.eq.f32.partialorder %v1262, inf
        %v1299 = vsel %vm1298, %v1262, %v1297
        %vm1300 = vcmp.eq.f32.partialorder %v1262, 0.0
        %v1301 = vand.u32 %v1262, 2147483648
        %v1302 = vsel %vm1300, %v1301, %v1299
        %v1303 = vrsqrt.pop %v1263
        %v1304 = vmul.f32 %v1263, %v1303
        %vm1305 = vcmp.eq.f32.partialorder %v1263, inf
        %v1306 = vsel %vm1305, %v1263, %v1304
        %vm1307 = vcmp.eq.f32.partialorder %v1263, 0.0
        %v1308 = vand.u32 %v1263, 2147483648
        %v1309 = vsel %vm1307, %v1308, %v1306
        %v1310 = vrsqrt.pop %v1264
        %v1311 = vmul.f32 %v1264, %v1310
        %vm1312 = vcmp.eq.f32.partialorder %v1264, inf
        %v1313 = vsel %vm1312, %v1264, %v1311
        %vm1314 = vcmp.eq.f32.partialorder %v1264, 0.0
        %v1315 = vand.u32 %v1264, 2147483648
        %v1316 = vsel %vm1314, %v1315, %v1313
        %v1317 = vrsqrt.pop %v1265
        %v1318 = vmul.f32 %v1265, %v1317
        %vm1319 = vcmp.eq.f32.partialorder %v1265, inf
        %v1320 = vsel %vm1319, %v1265, %v1318
        %vm1321 = vcmp.eq.f32.partialorder %v1265, 0.0
        %v1322 = vand.u32 %v1265, 2147483648
        %v1323 = vsel %vm1321, %v1322, %v1320
        %v1324 = vrsqrt.pop %v1266
        %v1325 = vmul.f32 %v1266, %v1324
        %vm1326 = vcmp.eq.f32.partialorder %v1266, inf
        %v1327 = vsel %vm1326, %v1266, %v1325
        %vm1328 = vcmp.eq.f32.partialorder %v1266, 0.0
        %v1329 = vand.u32 %v1266, 2147483648
        %v1330 = vsel %vm1328, %v1329, %v1327
        %v1331 = vrsqrt.pop %v1267
        %v1332 = vmul.f32 %v1267, %v1331
        %vm1333 = vcmp.eq.f32.partialorder %v1267, inf
        %v1334 = vsel %vm1333, %v1267, %v1332
        %vm1335 = vcmp.eq.f32.partialorder %v1267, 0.0
        %v1336 = vand.u32 %v1267, 2147483648
        %v1337 = vsel %vm1335, %v1336, %v1334
        %v1338 = vrsqrt.pop %v1268
        %v1339 = vmul.f32 %v1268, %v1338
        %vm1340 = vcmp.eq.f32.partialorder %v1268, inf
        %v1341 = vsel %vm1340, %v1268, %v1339
        %vm1342 = vcmp.eq.f32.partialorder %v1268, 0.0
        %v1343 = vand.u32 %v1268, 2147483648
        %v1344 = vsel %vm1342, %v1343, %v1341
        %v1345 = vrsqrt.pop %v1269
        %v1346 = vmul.f32 %v1269, %v1345
        %vm1347 = vcmp.eq.f32.partialorder %v1269, inf
        %v1348 = vsel %vm1347, %v1269, %v1346
        %vm1349 = vcmp.eq.f32.partialorder %v1269, 0.0
        %v1350 = vand.u32 %v1269, 2147483648
        %v1351 = vsel %vm1349, %v1350, %v1348
        %v1352 = vrsqrt.pop %v1270
        %v1353 = vmul.f32 %v1270, %v1352
        %vm1354 = vcmp.eq.f32.partialorder %v1270, inf
        %v1355 = vsel %vm1354, %v1270, %v1353
        %vm1356 = vcmp.eq.f32.partialorder %v1270, 0.0
        %v1357 = vand.u32 %v1270, 2147483648
        %v1358 = vsel %vm1356, %v1357, %v1355
        %v1359 = vrsqrt.pop %v1271
        %v1360 = vmul.f32 %v1271, %v1359
        %vm1361 = vcmp.eq.f32.partialorder %v1271, inf
        %v1362 = vsel %vm1361, %v1271, %v1360
        %vm1363 = vcmp.eq.f32.partialorder %v1271, 0.0
        %v1364 = vand.u32 %v1271, 2147483648
        %v1365 = vsel %vm1363, %v1364, %v1362
        %v1366 = vrsqrt.pop %v1272
        %v1367 = vmul.f32 %v1272, %v1366
        %vm1368 = vcmp.eq.f32.partialorder %v1272, inf
        %v1369 = vsel %vm1368, %v1272, %v1367
        %vm1370 = vcmp.eq.f32.partialorder %v1272, 0.0
        %v1371 = vand.u32 %v1272, 2147483648
        %v1372 = vsel %vm1370, %v1371, %v1369
        %v1373 = vrsqrt.pop %v1273
        %v1374 = vmul.f32 %v1273, %v1373
        %vm1375 = vcmp.eq.f32.partialorder %v1273, inf
        %v1376 = vsel %vm1375, %v1273, %v1374
        %vm1377 = vcmp.eq.f32.partialorder %v1273, 0.0
        %v1378 = vand.u32 %v1273, 2147483648
        %v1379 = vsel %vm1377, %v1378, %v1376
        %v1380 = vrsqrt.pop %v1274
        %v1381 = vmul.f32 %v1274, %v1380
        %vm1382 = vcmp.eq.f32.partialorder %v1274, inf
        %v1383 = vsel %vm1382, %v1274, %v1381
        %vm1384 = vcmp.eq.f32.partialorder %v1274, 0.0
        %v1385 = vand.u32 %v1274, 2147483648
        %v1386 = vsel %vm1384, %v1385, %v1383
        %v1387 = vld [vmem:[%s643] sm:$0xff]
        %v1388 = vld [vmem:[%s643 + $0x8] sm:$0xff]
        %v1389 = vld [vmem:[%s643 + $0x10] sm:$0xff]
        %v1390 = vld [vmem:[%s643 + $0x18] sm:$0xff]
        %v1391 = vld [vmem:[%s643 + $0x20] sm:$0xff]
        %v1392 = vld [vmem:[%s643 + $0x28] sm:$0xff]
        %v1393 = vld [vmem:[%s643 + $0x30] sm:$0xff]
        %v1394 = vld [vmem:[%s643 + $0x38] sm:$0xff]
        %v1395 = vld [vmem:[%s643 + $0x40] sm:$0xff]
        %v1396 = vld [vmem:[%s643 + $0x48] sm:$0xff]
        %v1397 = vld [vmem:[%s643 + $0x50] sm:$0xff]
        %v1398 = vld [vmem:[%s643 + $0x58] sm:$0xff]
        %v1399 = vld [vmem:[%s643 + $0x60] sm:$0xff]
        %v1400 = vld [vmem:[%s643 + $0x68] sm:$0xff]
        %v1401 = vld [vmem:[%s643 + $0x70] sm:$0xff]
        %v1402 = vld [vmem:[%s643 + $0x78] sm:$0xff]
        %v1403 = vld [vmem:[%s3] sm:$0xff]
        %v1404 = vld [vmem:[%s3 + $0x8] sm:$0xff]
        %v1405 = vld [vmem:[%s3 + $0x10] sm:$0xff]
        %v1406 = vld [vmem:[%s3 + $0x18] sm:$0xff]
        %v1407 = vld [vmem:[%s3 + $0x20] sm:$0xff]
        %v1408 = vld [vmem:[%s3 + $0x28] sm:$0xff]
        %v1409 = vld [vmem:[%s3 + $0x30] sm:$0xff]
        %v1410 = vld [vmem:[%s3 + $0x38] sm:$0xff]
        %v1411 = vld [vmem:[%s3 + $0x40] sm:$0xff]
        %v1412 = vld [vmem:[%s3 + $0x48] sm:$0xff]
        %v1413 = vld [vmem:[%s3 + $0x50] sm:$0xff]
        %v1414 = vld [vmem:[%s3 + $0x58] sm:$0xff]
        %v1415 = vld [vmem:[%s3 + $0x60] sm:$0xff]
        %v1416 = vld [vmem:[%s3 + $0x68] sm:$0xff]
        %v1417 = vld [vmem:[%s3 + $0x70] sm:$0xff]
        %v1418 = vld [vmem:[%s3 + $0x78] sm:$0xff]
        %v1419 = vld [vmem:[%s4] sm:$0xff]
        %v1420 = vld [vmem:[%s4 + $0x8] sm:$0xff]
        %v1421 = vld [vmem:[%s4 + $0x10] sm:$0xff]
        %v1422 = vld [vmem:[%s4 + $0x18] sm:$0xff]
        %v1423 = vld [vmem:[%s4 + $0x20] sm:$0xff]
        %v1424 = vld [vmem:[%s4 + $0x28] sm:$0xff]
        %v1425 = vld [vmem:[%s4 + $0x30] sm:$0xff]
        %v1426 = vld [vmem:[%s4 + $0x38] sm:$0xff]
        %v1427 = vld [vmem:[%s4 + $0x40] sm:$0xff]
        %v1428 = vld [vmem:[%s4 + $0x48] sm:$0xff]
        %v1429 = vld [vmem:[%s4 + $0x50] sm:$0xff]
        %v1430 = vld [vmem:[%s4 + $0x58] sm:$0xff]
        %v1431 = vld [vmem:[%s4 + $0x60] sm:$0xff]
        %v1432 = vld [vmem:[%s4 + $0x68] sm:$0xff]
        %v1433 = vld [vmem:[%s4 + $0x70] sm:$0xff]
        %v1434 = vld [vmem:[%s4 + $0x78] sm:$0xff]
        %1435 = vmatprep.subr.mxu0 0.0
        %1436 = vmatpush1.msra.mxu0 %v1434
        %1437 = vmatprep.subr.mxu0 0.0
        %1438 = vmatpush1.msra.mxu0 %v1433
        %1439 = vmatprep.subr.mxu0 0.0
        %1440 = vmatpush1.msra.mxu0 %v1432
        %1441 = vmatprep.subr.mxu0 0.0
        %1442 = vmatpush1.msra.mxu0 %v1431
        %1443 = vmatprep.subr.mxu0 0.0
        %1444 = vmatpush1.msra.mxu0 %v1430
        %1445 = vmatprep.subr.mxu0 0.0
        %1446 = vmatpush1.msra.mxu0 %v1429
        %1447 = vmatprep.subr.mxu0 0.0
        %1448 = vmatpush1.msra.mxu0 %v1428
        %1449 = vmatprep.subr.mxu0 0.0
        %1450 = vmatpush1.msra.mxu0 %v1427
        %1451 = vmatprep.subr.mxu0 0.0
        %1452 = vmatpush1.msra.mxu0 %v1426
        %1453 = vmatprep.subr.mxu0 0.0
        %1454 = vmatpush1.msra.mxu0 %v1425
        %1455 = vmatprep.subr.mxu0 0.0
        %1456 = vmatpush1.msra.mxu0 %v1424
        %1457 = vmatprep.subr.mxu0 0.0
        %1458 = vmatpush1.msra.mxu0 %v1423
        %1459 = vmatprep.subr.mxu0 0.0
        %1460 = vmatpush1.msra.mxu0 %v1422
        %1461 = vmatprep.subr.mxu0 0.0
        %1462 = vmatpush1.msra.mxu0 %v1421
        %1463 = vmatprep.subr.mxu0 0.0
        %1464 = vmatpush1.msra.mxu0 %v1420
        %1465 = vmatprep.subr.mxu0 0.0
        %1466 = vmatpush1.msra.mxu0 %v1419
        %1467 = vmatprep.subr.mxu0 0.0
        %1468 = vmatpush2.msra.mxu0 0.0
        %1469 = vmatprep.subr.mxu0 0.0
        %1470 = vmatpush2.msra.mxu0 0.0
        %1471 = vmatprep.subr.mxu0 0.0
        %1472 = vmatpush2.msra.mxu0 0.0
        %1473 = vmatprep.subr.mxu0 0.0
        %1474 = vmatpush2.msra.mxu0 0.0
        %1475 = vmatprep.subr.mxu0 0.0
        %1476 = vmatpush2.msra.mxu0 0.0
        %1477 = vmatprep.subr.mxu0 0.0
        %1478 = vmatpush2.msra.mxu0 0.0
        %1479 = vmatprep.subr.mxu0 0.0
        %1480 = vmatpush2.msra.mxu0 0.0
        %1481 = vmatprep.subr.mxu0 0.0
        %1482 = vmatpush2.msra.mxu0 0.0
        %1483 = vmatprep.subr.mxu0 0.0
        %1484 = vmatpush2.msra.mxu0 0.0
        %1485 = vmatprep.subr.mxu0 0.0
        %1486 = vmatpush2.msra.mxu0 0.0
        %1487 = vmatprep.subr.mxu0 0.0
        %1488 = vmatpush2.msra.mxu0 0.0
        %1489 = vmatprep.subr.mxu0 0.0
        %1490 = vmatpush2.msra.mxu0 0.0
        %1491 = vmatprep.subr.mxu0 0.0
        %1492 = vmatpush2.msra.mxu0 0.0
        %1493 = vmatprep.subr.mxu0 0.0
        %1494 = vmatpush2.msra.mxu0 0.0
        %1495 = vmatprep.subr.mxu0 0.0
        %1496 = vmatpush2.msra.mxu0 0.0
        %1497 = vmatprep.subr.mxu0 0.0
        %1498 = vmatpush2.msra.mxu0 0.0
        %1499 = vmatprep.mubr.f32.mxu0 0.0
        %1500 = vmatmul.mubr.f32.gmra.mxu0 %v1281
        %v1501 = vpop.f32.mrf.mxu0
        %v1502 = vadd.f32 0.0, %v1501
        %v1503 = vpop.f32.mrf.mxu0
        %1504 = vmatprep.mubr.f32.mxu0 0.0
        %1505 = vmatmul.mubr.f32.gmra.mxu0 %v1288
        %v1506 = vpop.f32.mrf.mxu0
        %v1507 = vadd.f32 0.0, %v1506
        %v1508 = vpop.f32.mrf.mxu0
        %1509 = vmatprep.mubr.f32.mxu0 0.0
        %1510 = vmatmul.mubr.f32.gmra.mxu0 %v1295
        %v1511 = vpop.f32.mrf.mxu0
        %v1512 = vadd.f32 0.0, %v1511
        %v1513 = vpop.f32.mrf.mxu0
        %1514 = vmatprep.mubr.f32.mxu0 0.0
        %1515 = vmatmul.mubr.f32.gmra.mxu0 %v1302
        %v1516 = vpop.f32.mrf.mxu0
        %v1517 = vadd.f32 0.0, %v1516
        %v1518 = vpop.f32.mrf.mxu0
        %1519 = vmatprep.mubr.f32.mxu0 0.0
        %1520 = vmatmul.mubr.f32.gmra.mxu0 %v1309
        %v1521 = vpop.f32.mrf.mxu0
        %v1522 = vadd.f32 0.0, %v1521
        %v1523 = vpop.f32.mrf.mxu0
        %1524 = vmatprep.mubr.f32.mxu0 0.0
        %1525 = vmatmul.mubr.f32.gmra.mxu0 %v1316
        %v1526 = vpop.f32.mrf.mxu0
        %v1527 = vadd.f32 0.0, %v1526
        %v1528 = vpop.f32.mrf.mxu0
        %1529 = vmatprep.mubr.f32.mxu0 0.0
        %1530 = vmatmul.mubr.f32.gmra.mxu0 %v1323
        %v1531 = vpop.f32.mrf.mxu0
        %v1532 = vadd.f32 0.0, %v1531
        %v1533 = vpop.f32.mrf.mxu0
        %1534 = vmatprep.mubr.f32.mxu0 0.0
        %1535 = vmatmul.mubr.f32.gmra.mxu0 %v1330
        %v1536 = vpop.f32.mrf.mxu0
        %v1537 = vadd.f32 0.0, %v1536
        %v1538 = vpop.f32.mrf.mxu0
        %1539 = vmatprep.mubr.f32.mxu0 0.0
        %1540 = vmatmul.mubr.f32.gmra.mxu0 %v1337
        %v1541 = vpop.f32.mrf.mxu0
        %v1542 = vadd.f32 0.0, %v1541
        %v1543 = vpop.f32.mrf.mxu0
        %1544 = vmatprep.mubr.f32.mxu0 0.0
        %1545 = vmatmul.mubr.f32.gmra.mxu0 %v1344
        %v1546 = vpop.f32.mrf.mxu0
        %v1547 = vadd.f32 0.0, %v1546
        %v1548 = vpop.f32.mrf.mxu0
        %1549 = vmatprep.mubr.f32.mxu0 0.0
        %1550 = vmatmul.mubr.f32.gmra.mxu0 %v1351
        %v1551 = vpop.f32.mrf.mxu0
        %v1552 = vadd.f32 0.0, %v1551
        %v1553 = vpop.f32.mrf.mxu0
        %1554 = vmatprep.mubr.f32.mxu0 0.0
        %1555 = vmatmul.mubr.f32.gmra.mxu0 %v1358
        %v1556 = vpop.f32.mrf.mxu0
        %v1557 = vadd.f32 0.0, %v1556
        %v1558 = vpop.f32.mrf.mxu0
        %1559 = vmatprep.mubr.f32.mxu0 0.0
        %1560 = vmatmul.mubr.f32.gmra.mxu0 %v1365
        %v1561 = vpop.f32.mrf.mxu0
        %v1562 = vadd.f32 0.0, %v1561
        %v1563 = vpop.f32.mrf.mxu0
        %1564 = vmatprep.mubr.f32.mxu0 0.0
        %1565 = vmatmul.mubr.f32.gmra.mxu0 %v1372
        %v1566 = vpop.f32.mrf.mxu0
        %v1567 = vadd.f32 0.0, %v1566
        %v1568 = vpop.f32.mrf.mxu0
        %1569 = vmatprep.mubr.f32.mxu0 0.0
        %1570 = vmatmul.mubr.f32.gmra.mxu0 %v1379
        %v1571 = vpop.f32.mrf.mxu0
        %v1572 = vadd.f32 0.0, %v1571
        %v1573 = vpop.f32.mrf.mxu0
        %1574 = vmatprep.mubr.f32.mxu0 0.0
        %1575 = vmatmul.mubr.f32.gmra.mxu0 %v1386
        %v1576 = vpop.f32.mrf.mxu0
        %v1577 = vadd.f32 0.0, %v1576
        %v1578 = vpop.f32.mrf.mxu0
        %1579 = vdwg.mxu0
        %1580 = vmatprep.subr.mxu0 0.0
        %1581 = vmatpush1.msra.mxu0 %v1418
        %1582 = vmatprep.subr.mxu0 0.0
        %1583 = vmatpush1.msra.mxu0 %v1417
        %1584 = vmatprep.subr.mxu0 0.0
        %1585 = vmatpush1.msra.mxu0 %v1416
        %1586 = vmatprep.subr.mxu0 0.0
        %1587 = vmatpush1.msra.mxu0 %v1415
        %1588 = vmatprep.subr.mxu0 0.0
        %1589 = vmatpush1.msra.mxu0 %v1414
        %1590 = vmatprep.subr.mxu0 0.0
        %1591 = vmatpush1.msra.mxu0 %v1413
        %1592 = vmatprep.subr.mxu0 0.0
        %1593 = vmatpush1.msra.mxu0 %v1412
        %1594 = vmatprep.subr.mxu0 0.0
        %1595 = vmatpush1.msra.mxu0 %v1411
        %1596 = vmatprep.subr.mxu0 0.0
        %1597 = vmatpush1.msra.mxu0 %v1410
        %1598 = vmatprep.subr.mxu0 0.0
        %1599 = vmatpush1.msra.mxu0 %v1409
        %1600 = vmatprep.subr.mxu0 0.0
        %1601 = vmatpush1.msra.mxu0 %v1408
        %1602 = vmatprep.subr.mxu0 0.0
        %1603 = vmatpush1.msra.mxu0 %v1407
        %1604 = vmatprep.subr.mxu0 0.0
        %1605 = vmatpush1.msra.mxu0 %v1406
        %1606 = vmatprep.subr.mxu0 0.0
        %1607 = vmatpush1.msra.mxu0 %v1405
        %1608 = vmatprep.subr.mxu0 0.0
        %1609 = vmatpush1.msra.mxu0 %v1404
        %1610 = vmatprep.subr.mxu0 0.0
        %1611 = vmatpush1.msra.mxu0 %v1403
        %1612 = vmatprep.subr.mxu0 0.0
        %1613 = vmatpush2.msra.mxu0 0.0
        %1614 = vmatprep.subr.mxu0 0.0
        %1615 = vmatpush2.msra.mxu0 0.0
        %1616 = vmatprep.subr.mxu0 0.0
        %1617 = vmatpush2.msra.mxu0 0.0
        %1618 = vmatprep.subr.mxu0 0.0
        %1619 = vmatpush2.msra.mxu0 0.0
        %1620 = vmatprep.subr.mxu0 0.0
        %1621 = vmatpush2.msra.mxu0 0.0
        %1622 = vmatprep.subr.mxu0 0.0
        %1623 = vmatpush2.msra.mxu0 0.0
        %1624 = vmatprep.subr.mxu0 0.0
        %1625 = vmatpush2.msra.mxu0 0.0
        %1626 = vmatprep.subr.mxu0 0.0
        %1627 = vmatpush2.msra.mxu0 0.0
        %1628 = vmatprep.subr.mxu0 0.0
        %1629 = vmatpush2.msra.mxu0 0.0
        %1630 = vmatprep.subr.mxu0 0.0
        %1631 = vmatpush2.msra.mxu0 0.0
        %1632 = vmatprep.subr.mxu0 0.0
        %1633 = vmatpush2.msra.mxu0 0.0
        %1634 = vmatprep.subr.mxu0 0.0
        %1635 = vmatpush2.msra.mxu0 0.0
        %1636 = vmatprep.subr.mxu0 0.0
        %1637 = vmatpush2.msra.mxu0 0.0
        %1638 = vmatprep.subr.mxu0 0.0
        %1639 = vmatpush2.msra.mxu0 0.0
        %1640 = vmatprep.subr.mxu0 0.0
        %1641 = vmatpush2.msra.mxu0 0.0
        %1642 = vmatprep.subr.mxu0 0.0
        %1643 = vmatpush2.msra.mxu0 0.0
        %1644 = vmatprep.mubr.f32.mxu0 0.0
        %1645 = vmatmul.mubr.f32.gmra.mxu0 %v1387
        %v1646 = vpop.f32.mrf.mxu0
        %v1647 = vadd.f32 %v1502, %v1646
        %v1648 = vpop.f32.mrf.mxu0
        %1649 = vmatprep.mubr.f32.mxu0 0.0
        %1650 = vmatmul.mubr.f32.gmra.mxu0 %v1388
        %v1651 = vpop.f32.mrf.mxu0
        %v1652 = vadd.f32 %v1507, %v1651
        %v1653 = vpop.f32.mrf.mxu0
        %1654 = vmatprep.mubr.f32.mxu0 0.0
        %1655 = vmatmul.mubr.f32.gmra.mxu0 %v1389
        %v1656 = vpop.f32.mrf.mxu0
        %v1657 = vadd.f32 %v1512, %v1656
        %v1658 = vpop.f32.mrf.mxu0
        %1659 = vmatprep.mubr.f32.mxu0 0.0
        %1660 = vmatmul.mubr.f32.gmra.mxu0 %v1390
        %v1661 = vpop.f32.mrf.mxu0
        %v1662 = vadd.f32 %v1517, %v1661
        %v1663 = vpop.f32.mrf.mxu0
        %1664 = vmatprep.mubr.f32.mxu0 0.0
        %1665 = vmatmul.mubr.f32.gmra.mxu0 %v1391
        %v1666 = vpop.f32.mrf.mxu0
        %v1667 = vadd.f32 %v1522, %v1666
        %v1668 = vpop.f32.mrf.mxu0
        %1669 = vmatprep.mubr.f32.mxu0 0.0
        %1670 = vmatmul.mubr.f32.gmra.mxu0 %v1392
        %v1671 = vpop.f32.mrf.mxu0
        %v1672 = vadd.f32 %v1527, %v1671
        %v1673 = vpop.f32.mrf.mxu0
        %1674 = vmatprep.mubr.f32.mxu0 0.0
        %1675 = vmatmul.mubr.f32.gmra.mxu0 %v1393
        %v1676 = vpop.f32.mrf.mxu0
        %v1677 = vadd.f32 %v1532, %v1676
        %v1678 = vpop.f32.mrf.mxu0
        %1679 = vmatprep.mubr.f32.mxu0 0.0
        %1680 = vmatmul.mubr.f32.gmra.mxu0 %v1394
        %v1681 = vpop.f32.mrf.mxu0
        %v1682 = vadd.f32 %v1537, %v1681
        %v1683 = vpop.f32.mrf.mxu0
        %1684 = vmatprep.mubr.f32.mxu0 0.0
        %1685 = vmatmul.mubr.f32.gmra.mxu0 %v1395
        %v1686 = vpop.f32.mrf.mxu0
        %v1687 = vadd.f32 %v1542, %v1686
        %v1688 = vpop.f32.mrf.mxu0
        %1689 = vmatprep.mubr.f32.mxu0 0.0
        %1690 = vmatmul.mubr.f32.gmra.mxu0 %v1396
        %v1691 = vpop.f32.mrf.mxu0
        %v1692 = vadd.f32 %v1547, %v1691
        %v1693 = vpop.f32.mrf.mxu0
        %1694 = vmatprep.mubr.f32.mxu0 0.0
        %1695 = vmatmul.mubr.f32.gmra.mxu0 %v1397
        %v1696 = vpop.f32.mrf.mxu0
        %v1697 = vadd.f32 %v1552, %v1696
        %v1698 = vpop.f32.mrf.mxu0
        %1699 = vmatprep.mubr.f32.mxu0 0.0
        %1700 = vmatmul.mubr.f32.gmra.mxu0 %v1398
        %v1701 = vpop.f32.mrf.mxu0
        %v1702 = vadd.f32 %v1557, %v1701
        %v1703 = vpop.f32.mrf.mxu0
        %1704 = vmatprep.mubr.f32.mxu0 0.0
        %1705 = vmatmul.mubr.f32.gmra.mxu0 %v1399
        %v1706 = vpop.f32.mrf.mxu0
        %v1707 = vadd.f32 %v1562, %v1706
        %v1708 = vpop.f32.mrf.mxu0
        %1709 = vmatprep.mubr.f32.mxu0 0.0
        %1710 = vmatmul.mubr.f32.gmra.mxu0 %v1400
        %v1711 = vpop.f32.mrf.mxu0
        %v1712 = vadd.f32 %v1567, %v1711
        %v1713 = vpop.f32.mrf.mxu0
        %1714 = vmatprep.mubr.f32.mxu0 0.0
        %1715 = vmatmul.mubr.f32.gmra.mxu0 %v1401
        %v1716 = vpop.f32.mrf.mxu0
        %v1717 = vadd.f32 %v1572, %v1716
        %v1718 = vpop.f32.mrf.mxu0
        %1719 = vmatprep.mubr.f32.mxu0 0.0
        %1720 = vmatmul.mubr.f32.gmra.mxu0 %v1402
        %v1721 = vpop.f32.mrf.mxu0
        %v1722 = vadd.f32 %v1577, %v1721
        %v1723 = vpop.f32.mrf.mxu0
        %1724 = vdwg.mxu0
        %v1725 = vld [vmem:[%s5] sm:$0x1]
        %v1727 = vlaneseq
        %v1728 = vshrl.u32 %v1727, 7
        %v1729 = vsub.s32 0, %v1728
        %v1730 = vrot.slane %v1725, %v1729
        %v1732 = vadd.f32 %v1647, %v1730
        %v1733 = vadd.f32 %v1652, %v1730
        %v1734 = vadd.f32 %v1657, %v1730
        %v1735 = vadd.f32 %v1662, %v1730
        %v1736 = vadd.f32 %v1667, %v1730
        %v1737 = vadd.f32 %v1672, %v1730
        %v1738 = vadd.f32 %v1677, %v1730
        %v1739 = vadd.f32 %v1682, %v1730
        %v1740 = vadd.f32 %v1687, %v1730
        %v1741 = vadd.f32 %v1692, %v1730
        %v1742 = vadd.f32 %v1697, %v1730
        %v1743 = vadd.f32 %v1702, %v1730
        %v1744 = vadd.f32 %v1707, %v1730
        %v1745 = vadd.f32 %v1712, %v1730
        %v1746 = vadd.f32 %v1717, %v1730
        %v1747 = vadd.f32 %v1722, %v1730
        %v1748 = vxor.u32 %v1732, 2147483648
        %v1749 = vxor.u32 %v1733, 2147483648
        %v1750 = vxor.u32 %v1734, 2147483648
        %v1751 = vxor.u32 %v1735, 2147483648
        %v1752 = vxor.u32 %v1736, 2147483648
        %v1753 = vxor.u32 %v1737, 2147483648
        %v1754 = vxor.u32 %v1738, 2147483648
        %v1755 = vxor.u32 %v1739, 2147483648
        %v1756 = vxor.u32 %v1740, 2147483648
        %v1757 = vxor.u32 %v1741, 2147483648
        %v1758 = vxor.u32 %v1742, 2147483648
        %v1759 = vxor.u32 %v1743, 2147483648
        %v1760 = vxor.u32 %v1744, 2147483648
        %v1761 = vxor.u32 %v1745, 2147483648
        %v1762 = vxor.u32 %v1746, 2147483648
        %v1763 = vxor.u32 %v1747, 2147483648
        %v1764 = vmul.f32 %v1748, 1.442695
        %v1765 = vpow.pop %v1764
        %v1766 = vmul.f32 %v1749, 1.442695
        %v1767 = vpow.pop %v1766
        %v1768 = vmul.f32 %v1750, 1.442695
        %v1769 = vpow.pop %v1768
        %v1770 = vmul.f32 %v1751, 1.442695
        %v1771 = vpow.pop %v1770
        %v1772 = vmul.f32 %v1752, 1.442695
        %v1773 = vpow.pop %v1772
        %v1774 = vmul.f32 %v1753, 1.442695
        %v1775 = vpow.pop %v1774
        %v1776 = vmul.f32 %v1754, 1.442695
        %v1777 = vpow.pop %v1776
        %v1778 = vmul.f32 %v1755, 1.442695
        %v1779 = vpow.pop %v1778
        %v1780 = vmul.f32 %v1756, 1.442695
        %v1781 = vpow.pop %v1780
        %v1782 = vmul.f32 %v1757, 1.442695
        %v1783 = vpow.pop %v1782
        %v1784 = vmul.f32 %v1758, 1.442695
        %v1785 = vpow.pop %v1784
        %v1786 = vmul.f32 %v1759, 1.442695
        %v1787 = vpow.pop %v1786
        %v1788 = vmul.f32 %v1760, 1.442695
        %v1789 = vpow.pop %v1788
        %v1790 = vmul.f32 %v1761, 1.442695
        %v1791 = vpow.pop %v1790
        %v1792 = vmul.f32 %v1762, 1.442695
        %v1793 = vpow.pop %v1792
        %v1794 = vmul.f32 %v1763, 1.442695
        %v1795 = vpow.pop %v1794
        %v1796 = vadd.f32 %v1765, 1.0
        %v1797 = vadd.f32 %v1767, 1.0
        %v1798 = vadd.f32 %v1769, 1.0
        %v1799 = vadd.f32 %v1771, 1.0
        %v1800 = vadd.f32 %v1773, 1.0
        %v1801 = vadd.f32 %v1775, 1.0
        %v1802 = vadd.f32 %v1777, 1.0
        %v1803 = vadd.f32 %v1779, 1.0
        %v1804 = vadd.f32 %v1781, 1.0
        %v1805 = vadd.f32 %v1783, 1.0
        %v1806 = vadd.f32 %v1785, 1.0
        %v1807 = vadd.f32 %v1787, 1.0
        %v1808 = vadd.f32 %v1789, 1.0
        %v1809 = vadd.f32 %v1791, 1.0
        %v1810 = vadd.f32 %v1793, 1.0
        %v1811 = vadd.f32 %v1795, 1.0
        %v1812 = vrcp.pop %v1796
        %v1813 = vmul.f32 1.0, %v1812
        %v1814 = vrcp.pop %v1797
        %v1815 = vmul.f32 1.0, %v1814
        %v1816 = vrcp.pop %v1798
        %v1817 = vmul.f32 1.0, %v1816
        %v1818 = vrcp.pop %v1799
        %v1819 = vmul.f32 1.0, %v1818
        %v1820 = vrcp.pop %v1800
        %v1821 = vmul.f32 1.0, %v1820
        %v1822 = vrcp.pop %v1801
        %v1823 = vmul.f32 1.0, %v1822
        %v1824 = vrcp.pop %v1802
        %v1825 = vmul.f32 1.0, %v1824
        %v1826 = vrcp.pop %v1803
        %v1827 = vmul.f32 1.0, %v1826
        %v1828 = vrcp.pop %v1804
        %v1829 = vmul.f32 1.0, %v1828
        %v1830 = vrcp.pop %v1805
        %v1831 = vmul.f32 1.0, %v1830
        %v1832 = vrcp.pop %v1806
        %v1833 = vmul.f32 1.0, %v1832
        %v1834 = vrcp.pop %v1807
        %v1835 = vmul.f32 1.0, %v1834
        %v1836 = vrcp.pop %v1808
        %v1837 = vmul.f32 1.0, %v1836
        %v1838 = vrcp.pop %v1809
        %v1839 = vmul.f32 1.0, %v1838
        %v1840 = vrcp.pop %v1810
        %v1841 = vmul.f32 1.0, %v1840
        %v1842 = vrcp.pop %v1811
        %v1843 = vmul.f32 1.0, %v1842
        %v1844 = vmul.f32 %v1732, %v1813
        %v1845 = vmul.f32 %v1733, %v1815
        %v1846 = vmul.f32 %v1734, %v1817
        %v1847 = vmul.f32 %v1735, %v1819
        %v1848 = vmul.f32 %v1736, %v1821
        %v1849 = vmul.f32 %v1737, %v1823
        %v1850 = vmul.f32 %v1738, %v1825
        %v1851 = vmul.f32 %v1739, %v1827
        %v1852 = vmul.f32 %v1740, %v1829
        %v1853 = vmul.f32 %v1741, %v1831
        %v1854 = vmul.f32 %v1742, %v1833
        %v1855 = vmul.f32 %v1743, %v1835
        %v1856 = vmul.f32 %v1744, %v1837
        %v1857 = vmul.f32 %v1745, %v1839
        %v1858 = vmul.f32 %v1746, %v1841
        %v1859 = vmul.f32 %v1747, %v1843
        %v1860 = vld [vmem:[%s6] sm:$0xff]
        %v1861 = vld [vmem:[%s6 + $0x8] sm:$0xff]
        %v1862 = vld [vmem:[%s6 + $0x10] sm:$0xff]
        %v1863 = vld [vmem:[%s6 + $0x18] sm:$0xff]
        %v1864 = vld [vmem:[%s6 + $0x20] sm:$0xff]
        %v1865 = vld [vmem:[%s6 + $0x28] sm:$0xff]
        %v1866 = vld [vmem:[%s6 + $0x30] sm:$0xff]
        %v1867 = vld [vmem:[%s6 + $0x38] sm:$0xff]
        %v1868 = vld [vmem:[%s6 + $0x40] sm:$0xff]
        %v1869 = vld [vmem:[%s6 + $0x48] sm:$0xff]
        %v1870 = vld [vmem:[%s6 + $0x50] sm:$0xff]
        %v1871 = vld [vmem:[%s6 + $0x58] sm:$0xff]
        %v1872 = vld [vmem:[%s6 + $0x60] sm:$0xff]
        %v1873 = vld [vmem:[%s6 + $0x68] sm:$0xff]
        %v1874 = vld [vmem:[%s6 + $0x70] sm:$0xff]
        %v1875 = vld [vmem:[%s6 + $0x78] sm:$0xff]
        %v1876 = vld [vmem:[%s6 + $0x80] sm:$0xff]
        %v1877 = vld [vmem:[%s6 + $0x88] sm:$0xff]
        %v1878 = vld [vmem:[%s6 + $0x90] sm:$0xff]
        %v1879 = vld [vmem:[%s6 + $0x98] sm:$0xff]
        %v1880 = vld [vmem:[%s6 + $0xa0] sm:$0xff]
        %v1881 = vld [vmem:[%s6 + $0xa8] sm:$0xff]
        %v1882 = vld [vmem:[%s6 + $0xb0] sm:$0xff]
        %v1883 = vld [vmem:[%s6 + $0xb8] sm:$0xff]
        %v1884 = vld [vmem:[%s6 + $0xc0] sm:$0xff]
        %v1885 = vld [vmem:[%s6 + $0xc8] sm:$0xff]
        %v1886 = vld [vmem:[%s6 + $0xd0] sm:$0xff]
        %v1887 = vld [vmem:[%s6 + $0xd8] sm:$0xff]
        %v1888 = vld [vmem:[%s6 + $0xe0] sm:$0xff]
        %v1889 = vld [vmem:[%s6 + $0xe8] sm:$0xff]
        %v1890 = vld [vmem:[%s6 + $0xf0] sm:$0xff]
        %v1891 = vld [vmem:[%s6 + $0xf8] sm:$0xff]
        %v1892 = vld [vmem:[%s6 + $0x100] sm:$0xff]
        %v1893 = vld [vmem:[%s6 + $0x108] sm:$0xff]
        %v1894 = vld [vmem:[%s6 + $0x110] sm:$0xff]
        %v1895 = vld [vmem:[%s6 + $0x118] sm:$0xff]
        %v1896 = vld [vmem:[%s6 + $0x120] sm:$0xff]
        %v1897 = vld [vmem:[%s6 + $0x128] sm:$0xff]
        %v1898 = vld [vmem:[%s6 + $0x130] sm:$0xff]
        %v1899 = vld [vmem:[%s6 + $0x138] sm:$0xff]
        %v1900 = vld [vmem:[%s6 + $0x140] sm:$0xff]
        %v1901 = vld [vmem:[%s6 + $0x148] sm:$0xff]
        %v1902 = vld [vmem:[%s6 + $0x150] sm:$0xff]
        %v1903 = vld [vmem:[%s6 + $0x158] sm:$0xff]
        %v1904 = vld [vmem:[%s6 + $0x160] sm:$0xff]
        %v1905 = vld [vmem:[%s6 + $0x168] sm:$0xff]
        %v1906 = vld [vmem:[%s6 + $0x170] sm:$0xff]
        %v1907 = vld [vmem:[%s6 + $0x178] sm:$0xff]
        %v1908 = vld [vmem:[%s7] sm:$0x7]
        %v1910 = vlaneseq
        %v1911 = vshrl.u32 %v1910, 7
        %v1912 = vsub.s32 0, %v1911
        %v1913 = vrot.slane %v1908, %v1912
        %v1914 = vlaneseq
        %v1915 = vshrl.u32 %v1914, 7
        %v1916 = vsub.s32 1, %v1915
        %v1917 = vrot.slane %v1908, %v1916
        %v1918 = vlaneseq
        %v1919 = vshrl.u32 %v1918, 7
        %v1920 = vsub.s32 2, %v1919
        %v1921 = vrot.slane %v1908, %v1920
        %1925 = vmatprep.subr.mxu0 %v1906
        %1926 = vmatpush1.msra.mxu0 %v1905
        %1927 = vmatprep.subr.mxu0 %v1903
        %1928 = vmatpush1.msra.mxu0 %v1902
        %1929 = vmatprep.subr.mxu0 %v1900
        %1930 = vmatpush1.msra.mxu0 %v1899
        %1931 = vmatprep.subr.mxu0 %v1897
        %1932 = vmatpush1.msra.mxu0 %v1896
        %1933 = vmatprep.subr.mxu0 %v1894
        %1934 = vmatpush1.msra.mxu0 %v1893
        %1935 = vmatprep.subr.mxu0 %v1891
        %1936 = vmatpush1.msra.mxu0 %v1890
        %1937 = vmatprep.subr.mxu0 %v1888
        %1938 = vmatpush1.msra.mxu0 %v1887
        %1939 = vmatprep.subr.mxu0 %v1885
        %1940 = vmatpush1.msra.mxu0 %v1884
        %1941 = vmatprep.subr.mxu0 %v1882
        %1942 = vmatpush1.msra.mxu0 %v1881
        %1943 = vmatprep.subr.mxu0 %v1879
        %1944 = vmatpush1.msra.mxu0 %v1878
        %1945 = vmatprep.subr.mxu0 %v1876
        %1946 = vmatpush1.msra.mxu0 %v1875
        %1947 = vmatprep.subr.mxu0 %v1873
        %1948 = vmatpush1.msra.mxu0 %v1872
        %1949 = vmatprep.subr.mxu0 %v1870
        %1950 = vmatpush1.msra.mxu0 %v1869
        %1951 = vmatprep.subr.mxu0 %v1867
        %1952 = vmatpush1.msra.mxu0 %v1866
        %1953 = vmatprep.subr.mxu0 %v1864
        %1954 = vmatpush1.msra.mxu0 %v1863
        %1955 = vmatprep.subr.mxu0 %v1861
        %1956 = vmatpush1.msra.mxu0 %v1860
        %1957 = vmatprep.subr.mxu0 0.0
        %1958 = vmatpush2.msra.mxu0 0.0
        %1959 = vmatprep.subr.mxu0 0.0
        %1960 = vmatpush2.msra.mxu0 0.0
        %1961 = vmatprep.subr.mxu0 0.0
        %1962 = vmatpush2.msra.mxu0 0.0
        %1963 = vmatprep.subr.mxu0 0.0
        %1964 = vmatpush2.msra.mxu0 0.0
        %1965 = vmatprep.subr.mxu0 0.0
        %1966 = vmatpush2.msra.mxu0 0.0
        %1967 = vmatprep.subr.mxu0 0.0
        %1968 = vmatpush2.msra.mxu0 0.0
        %1969 = vmatprep.subr.mxu0 0.0
        %1970 = vmatpush2.msra.mxu0 0.0
        %1971 = vmatprep.subr.mxu0 0.0
        %1972 = vmatpush2.msra.mxu0 0.0
        %1973 = vmatprep.subr.mxu0 0.0
        %1974 = vmatpush2.msra.mxu0 0.0
        %1975 = vmatprep.subr.mxu0 0.0
        %1976 = vmatpush2.msra.mxu0 0.0
        %1977 = vmatprep.subr.mxu0 0.0
        %1978 = vmatpush2.msra.mxu0 0.0
        %1979 = vmatprep.subr.mxu0 0.0
        %1980 = vmatpush2.msra.mxu0 0.0
        %1981 = vmatprep.subr.mxu0 0.0
        %1982 = vmatpush2.msra.mxu0 0.0
        %1983 = vmatprep.subr.mxu0 0.0
        %1984 = vmatpush2.msra.mxu0 0.0
        %1985 = vmatprep.subr.mxu0 0.0
        %1986 = vmatpush2.msra.mxu0 0.0
        %1987 = vmatprep.subr.mxu0 0.0
        %1988 = vmatpush2.msra.mxu0 0.0
        %1989 = vmatprep.mubr.f32.mxu0 0.0
        %1990 = vmatmul.mubr.f32.gmra.mxu0 %v1844
        %v1991 = vpop.f32.mrf.mxu0
        %v1992 = vadd.f32 %v1913, %v1991
        %v1993 = vpop.f32.mrf.mxu0
        %v1994 = vadd.f32 %v1917, %v1993
        %1995 = vmatprep.mubr.f32.mxu0 0.0
        %1996 = vmatmul.mubr.f32.gmra.mxu0 %v1845
        %v1997 = vpop.f32.mrf.mxu0
        %v1998 = vadd.f32 %v1913, %v1997
        %v1999 = vpop.f32.mrf.mxu0
        %v2000 = vadd.f32 %v1917, %v1999
        %2001 = vmatprep.mubr.f32.mxu0 0.0
        %2002 = vmatmul.mubr.f32.gmra.mxu0 %v1846
        %v2003 = vpop.f32.mrf.mxu0
        %v2004 = vadd.f32 %v1913, %v2003
        %v2005 = vpop.f32.mrf.mxu0
        %v2006 = vadd.f32 %v1917, %v2005
        %2007 = vmatprep.mubr.f32.mxu0 0.0
        %2008 = vmatmul.mubr.f32.gmra.mxu0 %v1847
        %v2009 = vpop.f32.mrf.mxu0
        %v2010 = vadd.f32 %v1913, %v2009
        %v2011 = vpop.f32.mrf.mxu0
        %v2012 = vadd.f32 %v1917, %v2011
        %2013 = vmatprep.mubr.f32.mxu0 0.0
        %2014 = vmatmul.mubr.f32.gmra.mxu0 %v1848
        %v2015 = vpop.f32.mrf.mxu0
        %v2016 = vadd.f32 %v1913, %v2015
        %v2017 = vpop.f32.mrf.mxu0
        %v2018 = vadd.f32 %v1917, %v2017
        %2019 = vmatprep.mubr.f32.mxu0 0.0
        %2020 = vmatmul.mubr.f32.gmra.mxu0 %v1849
        %v2021 = vpop.f32.mrf.mxu0
        %v2022 = vadd.f32 %v1913, %v2021
        %v2023 = vpop.f32.mrf.mxu0
        %v2024 = vadd.f32 %v1917, %v2023
        %2025 = vmatprep.mubr.f32.mxu0 0.0
        %2026 = vmatmul.mubr.f32.gmra.mxu0 %v1850
        %v2027 = vpop.f32.mrf.mxu0
        %v2028 = vadd.f32 %v1913, %v2027
        %v2029 = vpop.f32.mrf.mxu0
        %v2030 = vadd.f32 %v1917, %v2029
        %2031 = vmatprep.mubr.f32.mxu0 0.0
        %2032 = vmatmul.mubr.f32.gmra.mxu0 %v1851
        %v2033 = vpop.f32.mrf.mxu0
        %v2034 = vadd.f32 %v1913, %v2033
        %v2035 = vpop.f32.mrf.mxu0
        %v2036 = vadd.f32 %v1917, %v2035
        %2037 = vmatprep.mubr.f32.mxu0 0.0
        %2038 = vmatmul.mubr.f32.gmra.mxu0 %v1852
        %v2039 = vpop.f32.mrf.mxu0
        %v2040 = vadd.f32 %v1913, %v2039
        %v2041 = vpop.f32.mrf.mxu0
        %v2042 = vadd.f32 %v1917, %v2041
        %2043 = vmatprep.mubr.f32.mxu0 0.0
        %2044 = vmatmul.mubr.f32.gmra.mxu0 %v1853
        %v2045 = vpop.f32.mrf.mxu0
        %v2046 = vadd.f32 %v1913, %v2045
        %v2047 = vpop.f32.mrf.mxu0
        %v2048 = vadd.f32 %v1917, %v2047
        %2049 = vmatprep.mubr.f32.mxu0 0.0
        %2050 = vmatmul.mubr.f32.gmra.mxu0 %v1854
        %v2051 = vpop.f32.mrf.mxu0
        %v2052 = vadd.f32 %v1913, %v2051
        %v2053 = vpop.f32.mrf.mxu0
        %v2054 = vadd.f32 %v1917, %v2053
        %2055 = vmatprep.mubr.f32.mxu0 0.0
        %2056 = vmatmul.mubr.f32.gmra.mxu0 %v1855
        %v2057 = vpop.f32.mrf.mxu0
        %v2058 = vadd.f32 %v1913, %v2057
        %v2059 = vpop.f32.mrf.mxu0
        %v2060 = vadd.f32 %v1917, %v2059
        %2061 = vmatprep.mubr.f32.mxu0 0.0
        %2062 = vmatmul.mubr.f32.gmra.mxu0 %v1856
        %v2063 = vpop.f32.mrf.mxu0
        %v2064 = vadd.f32 %v1913, %v2063
        %v2065 = vpop.f32.mrf.mxu0
        %v2066 = vadd.f32 %v1917, %v2065
        %2067 = vmatprep.mubr.f32.mxu0 0.0
        %2068 = vmatmul.mubr.f32.gmra.mxu0 %v1857
        %v2069 = vpop.f32.mrf.mxu0
        %v2070 = vadd.f32 %v1913, %v2069
        %v2071 = vpop.f32.mrf.mxu0
        %v2072 = vadd.f32 %v1917, %v2071
        %2073 = vmatprep.mubr.f32.mxu0 0.0
        %2074 = vmatmul.mubr.f32.gmra.mxu0 %v1858
        %v2075 = vpop.f32.mrf.mxu0
        %v2076 = vadd.f32 %v1913, %v2075
        %v2077 = vpop.f32.mrf.mxu0
        %v2078 = vadd.f32 %v1917, %v2077
        %2079 = vmatprep.mubr.f32.mxu0 0.0
        %2080 = vmatmul.mubr.f32.gmra.mxu0 %v1859
        %v2081 = vpop.f32.mrf.mxu0
        %v2082 = vadd.f32 %v1913, %v2081
        %v2083 = vpop.f32.mrf.mxu0
        %v2084 = vadd.f32 %v1917, %v2083
        %2085 = vdwg.mxu0
        %2086 = vmatprep.subr.mxu0 0.0
        %2087 = vmatpush1.msra.mxu0 %v1907
        %2088 = vmatprep.subr.mxu0 0.0
        %2089 = vmatpush1.msra.mxu0 %v1904
        %2090 = vmatprep.subr.mxu0 0.0
        %2091 = vmatpush1.msra.mxu0 %v1901
        %2092 = vmatprep.subr.mxu0 0.0
        %2093 = vmatpush1.msra.mxu0 %v1898
        %2094 = vmatprep.subr.mxu0 0.0
        %2095 = vmatpush1.msra.mxu0 %v1895
        %2096 = vmatprep.subr.mxu0 0.0
        %2097 = vmatpush1.msra.mxu0 %v1892
        %2098 = vmatprep.subr.mxu0 0.0
        %2099 = vmatpush1.msra.mxu0 %v1889
        %2100 = vmatprep.subr.mxu0 0.0
        %2101 = vmatpush1.msra.mxu0 %v1886
        %2102 = vmatprep.subr.mxu0 0.0
        %2103 = vmatpush1.msra.mxu0 %v1883
        %2104 = vmatprep.subr.mxu0 0.0
        %2105 = vmatpush1.msra.mxu0 %v1880
        %2106 = vmatprep.subr.mxu0 0.0
        %2107 = vmatpush1.msra.mxu0 %v1877
        %2108 = vmatprep.subr.mxu0 0.0
        %2109 = vmatpush1.msra.mxu0 %v1874
        %2110 = vmatprep.subr.mxu0 0.0
        %2111 = vmatpush1.msra.mxu0 %v1871
        %2112 = vmatprep.subr.mxu0 0.0
        %2113 = vmatpush1.msra.mxu0 %v1868
        %2114 = vmatprep.subr.mxu0 0.0
        %2115 = vmatpush1.msra.mxu0 %v1865
        %2116 = vmatprep.subr.mxu0 0.0
        %2117 = vmatpush1.msra.mxu0 %v1862
        %2118 = vmatprep.subr.mxu0 0.0
        %2119 = vmatpush2.msra.mxu0 0.0
        %2120 = vmatprep.subr.mxu0 0.0
        %2121 = vmatpush2.msra.mxu0 0.0
        %2122 = vmatprep.subr.mxu0 0.0
        %2123 = vmatpush2.msra.mxu0 0.0
        %2124 = vmatprep.subr.mxu0 0.0
        %2125 = vmatpush2.msra.mxu0 0.0
        %2126 = vmatprep.subr.mxu0 0.0
        %2127 = vmatpush2.msra.mxu0 0.0
        %2128 = vmatprep.subr.mxu0 0.0
        %2129 = vmatpush2.msra.mxu0 0.0
        %2130 = vmatprep.subr.mxu0 0.0
        %2131 = vmatpush2.msra.mxu0 0.0
        %2132 = vmatprep.subr.mxu0 0.0
        %2133 = vmatpush2.msra.mxu0 0.0
        %2134 = vmatprep.subr.mxu0 0.0
        %2135 = vmatpush2.msra.mxu0 0.0
        %2136 = vmatprep.subr.mxu0 0.0
        %2137 = vmatpush2.msra.mxu0 0.0
        %2138 = vmatprep.subr.mxu0 0.0
        %2139 = vmatpush2.msra.mxu0 0.0
        %2140 = vmatprep.subr.mxu0 0.0
        %2141 = vmatpush2.msra.mxu0 0.0
        %2142 = vmatprep.subr.mxu0 0.0
        %2143 = vmatpush2.msra.mxu0 0.0
        %2144 = vmatprep.subr.mxu0 0.0
        %2145 = vmatpush2.msra.mxu0 0.0
        %2146 = vmatprep.subr.mxu0 0.0
        %2147 = vmatpush2.msra.mxu0 0.0
        %2148 = vmatprep.subr.mxu0 0.0
        %2149 = vmatpush2.msra.mxu0 0.0
        %2150 = vmatprep.mubr.f32.mxu0 0.0
        %2151 = vmatmul.mubr.f32.gmra.mxu0 %v1844
        %v2152 = vpop.f32.mrf.mxu0
        %v2153 = vadd.f32 %v1921, %v2152
        %v2154 = vpop.f32.mrf.mxu0
        %2155 = vmatprep.mubr.f32.mxu0 0.0
        %2156 = vmatmul.mubr.f32.gmra.mxu0 %v1845
        %v2157 = vpop.f32.mrf.mxu0
        %v2158 = vadd.f32 %v1921, %v2157
        %v2159 = vpop.f32.mrf.mxu0
        %2160 = vmatprep.mubr.f32.mxu0 0.0
        %2161 = vmatmul.mubr.f32.gmra.mxu0 %v1846
        %v2162 = vpop.f32.mrf.mxu0
        %v2163 = vadd.f32 %v1921, %v2162
        %v2164 = vpop.f32.mrf.mxu0
        %2165 = vmatprep.mubr.f32.mxu0 0.0
        %2166 = vmatmul.mubr.f32.gmra.mxu0 %v1847
        %v2167 = vpop.f32.mrf.mxu0
        %v2168 = vadd.f32 %v1921, %v2167
        %v2169 = vpop.f32.mrf.mxu0
        %2170 = vmatprep.mubr.f32.mxu0 0.0
        %2171 = vmatmul.mubr.f32.gmra.mxu0 %v1848
        %v2172 = vpop.f32.mrf.mxu0
        %v2173 = vadd.f32 %v1921, %v2172
        %v2174 = vpop.f32.mrf.mxu0
        %2175 = vmatprep.mubr.f32.mxu0 0.0
        %2176 = vmatmul.mubr.f32.gmra.mxu0 %v1849
        %v2177 = vpop.f32.mrf.mxu0
        %v2178 = vadd.f32 %v1921, %v2177
        %v2179 = vpop.f32.mrf.mxu0
        %2180 = vmatprep.mubr.f32.mxu0 0.0
        %2181 = vmatmul.mubr.f32.gmra.mxu0 %v1850
        %v2182 = vpop.f32.mrf.mxu0
        %v2183 = vadd.f32 %v1921, %v2182
        %v2184 = vpop.f32.mrf.mxu0
        %2185 = vmatprep.mubr.f32.mxu0 0.0
        %2186 = vmatmul.mubr.f32.gmra.mxu0 %v1851
        %v2187 = vpop.f32.mrf.mxu0
        %v2188 = vadd.f32 %v1921, %v2187
        %v2189 = vpop.f32.mrf.mxu0
        %2190 = vmatprep.mubr.f32.mxu0 0.0
        %2191 = vmatmul.mubr.f32.gmra.mxu0 %v1852
        %v2192 = vpop.f32.mrf.mxu0
        %v2193 = vadd.f32 %v1921, %v2192
        %v2194 = vpop.f32.mrf.mxu0
        %2195 = vmatprep.mubr.f32.mxu0 0.0
        %2196 = vmatmul.mubr.f32.gmra.mxu0 %v1853
        %v2197 = vpop.f32.mrf.mxu0
        %v2198 = vadd.f32 %v1921, %v2197
        %v2199 = vpop.f32.mrf.mxu0
        %2200 = vmatprep.mubr.f32.mxu0 0.0
        %2201 = vmatmul.mubr.f32.gmra.mxu0 %v1854
        %v2202 = vpop.f32.mrf.mxu0
        %v2203 = vadd.f32 %v1921, %v2202
        %v2204 = vpop.f32.mrf.mxu0
        %2205 = vmatprep.mubr.f32.mxu0 0.0
        %2206 = vmatmul.mubr.f32.gmra.mxu0 %v1855
        %v2207 = vpop.f32.mrf.mxu0
        %v2208 = vadd.f32 %v1921, %v2207
        %v2209 = vpop.f32.mrf.mxu0
        %2210 = vmatprep.mubr.f32.mxu0 0.0
        %2211 = vmatmul.mubr.f32.gmra.mxu0 %v1856
        %v2212 = vpop.f32.mrf.mxu0
        %v2213 = vadd.f32 %v1921, %v2212
        %v2214 = vpop.f32.mrf.mxu0
        %2215 = vmatprep.mubr.f32.mxu0 0.0
        %2216 = vmatmul.mubr.f32.gmra.mxu0 %v1857
        %v2217 = vpop.f32.mrf.mxu0
        %v2218 = vadd.f32 %v1921, %v2217
        %v2219 = vpop.f32.mrf.mxu0
        %2220 = vmatprep.mubr.f32.mxu0 0.0
        %2221 = vmatmul.mubr.f32.gmra.mxu0 %v1858
        %v2222 = vpop.f32.mrf.mxu0
        %v2223 = vadd.f32 %v1921, %v2222
        %v2224 = vpop.f32.mrf.mxu0
        %2225 = vmatprep.mubr.f32.mxu0 0.0
        %2226 = vmatmul.mubr.f32.gmra.mxu0 %v1859
        %v2227 = vpop.f32.mrf.mxu0
        %v2228 = vadd.f32 %v1921, %v2227
        %v2229 = vpop.f32.mrf.mxu0
        %2230 = vdwg.mxu0
        %v2231 = vmul.f32 %v861, %v1992
        %v2232 = vmul.f32 %v867, %v1998
        %v2233 = vmul.f32 %v873, %v2004
        %v2234 = vmul.f32 %v879, %v2010
        %v2235 = vmul.f32 %v885, %v2016
        %v2236 = vmul.f32 %v891, %v2022
        %v2237 = vmul.f32 %v897, %v2028
        %v2238 = vmul.f32 %v903, %v2034
        %v2239 = vmul.f32 %v909, %v2040
        %v2240 = vmul.f32 %v915, %v2046
        %v2241 = vmul.f32 %v921, %v2052
        %v2242 = vmul.f32 %v927, %v2058
        %v2243 = vmul.f32 %v933, %v2064
        %v2244 = vmul.f32 %v939, %v2070
        %v2245 = vmul.f32 %v945, %v2076
        %v2246 = vmul.f32 %v951, %v2082
        %v2247 = vmul.f32 %v957, %v1992
        %v2248 = vmul.f32 %v963, %v1998
        %v2249 = vmul.f32 %v969, %v2004
        %v2250 = vmul.f32 %v975, %v2010
        %v2251 = vmul.f32 %v981, %v2016
        %v2252 = vmul.f32 %v987, %v2022
        %v2253 = vmul.f32 %v993, %v2028
        %v2254 = vmul.f32 %v999, %v2034
        %v2255 = vmul.f32 %v1005, %v2040
        %v2256 = vmul.f32 %v1011, %v2046
        %v2257 = vmul.f32 %v1017, %v2052
        %v2258 = vmul.f32 %v1023, %v2058
        %v2259 = vmul.f32 %v1029, %v2064
        %v2260 = vmul.f32 %v1035, %v2070
        %v2261 = vmul.f32 %v1041, %v2076
        %v2262 = vmul.f32 %v1047, %v2082
        %v2263 = vmul.f32 %v1053, %v1992
        %v2264 = vmul.f32 %v1059, %v1998
        %v2265 = vmul.f32 %v1065, %v2004
        %v2266 = vmul.f32 %v1071, %v2010
        %v2267 = vmul.f32 %v1077, %v2016
        %v2268 = vmul.f32 %v1083, %v2022
        %v2269 = vmul.f32 %v1089, %v2028
        %v2270 = vmul.f32 %v1095, %v2034
        %v2271 = vmul.f32 %v1101, %v2040
        %v2272 = vmul.f32 %v1107, %v2046
        %v2273 = vmul.f32 %v1113, %v2052
        %v2274 = vmul.f32 %v1119, %v2058
        %v2275 = vmul.f32 %v1125, %v2064
        %v2276 = vmul.f32 %v1131, %v2070
        %v2277 = vmul.f32 %v1137, %v2076
        %v2278 = vmul.f32 %v1143, %v2082
        %2279 = vst [vmem:[%s693] sm:$0xff] %v2231
        %2280 = vst [vmem:[%s693 + $0x8] sm:$0xff] %v2232
        %2281 = vst [vmem:[%s693 + $0x10] sm:$0xff] %v2233
        %2282 = vst [vmem:[%s693 + $0x18] sm:$0xff] %v2234
        %2283 = vst [vmem:[%s693 + $0x20] sm:$0xff] %v2235
        %2284 = vst [vmem:[%s693 + $0x28] sm:$0xff] %v2236
        %2285 = vst [vmem:[%s693 + $0x30] sm:$0xff] %v2237
        %2286 = vst [vmem:[%s693 + $0x38] sm:$0xff] %v2238
        %2287 = vst [vmem:[%s693 + $0x40] sm:$0xff] %v2239
        %2288 = vst [vmem:[%s693 + $0x48] sm:$0xff] %v2240
        %2289 = vst [vmem:[%s693 + $0x50] sm:$0xff] %v2241
        %2290 = vst [vmem:[%s693 + $0x58] sm:$0xff] %v2242
        %2291 = vst [vmem:[%s693 + $0x60] sm:$0xff] %v2243
        %2292 = vst [vmem:[%s693 + $0x68] sm:$0xff] %v2244
        %2293 = vst [vmem:[%s693 + $0x70] sm:$0xff] %v2245
        %2294 = vst [vmem:[%s693 + $0x78] sm:$0xff] %v2246
        %2295 = vst [vmem:[%s693 + $0x80] sm:$0xff] %v2247
        %2296 = vst [vmem:[%s693 + $0x88] sm:$0xff] %v2248
        %2297 = vst [vmem:[%s693 + $0x90] sm:$0xff] %v2249
        %2298 = vst [vmem:[%s693 + $0x98] sm:$0xff] %v2250
        %2299 = vst [vmem:[%s693 + $0xa0] sm:$0xff] %v2251
        %2300 = vst [vmem:[%s693 + $0xa8] sm:$0xff] %v2252
        %2301 = vst [vmem:[%s693 + $0xb0] sm:$0xff] %v2253
        %2302 = vst [vmem:[%s693 + $0xb8] sm:$0xff] %v2254
        %2303 = vst [vmem:[%s693 + $0xc0] sm:$0xff] %v2255
        %2304 = vst [vmem:[%s693 + $0xc8] sm:$0xff] %v2256
        %2305 = vst [vmem:[%s693 + $0xd0] sm:$0xff] %v2257
        %2306 = vst [vmem:[%s693 + $0xd8] sm:$0xff] %v2258
        %2307 = vst [vmem:[%s693 + $0xe0] sm:$0xff] %v2259
        %2308 = vst [vmem:[%s693 + $0xe8] sm:$0xff] %v2260
        %2309 = vst [vmem:[%s693 + $0xf0] sm:$0xff] %v2261
        %2310 = vst [vmem:[%s693 + $0xf8] sm:$0xff] %v2262
        %2311 = vst [vmem:[%s693 + $0x100] sm:$0xff] %v2263
        %2312 = vst [vmem:[%s693 + $0x108] sm:$0xff] %v2264
        %2313 = vst [vmem:[%s693 + $0x110] sm:$0xff] %v2265
        %2314 = vst [vmem:[%s693 + $0x118] sm:$0xff] %v2266
        %2315 = vst [vmem:[%s693 + $0x120] sm:$0xff] %v2267
        %2316 = vst [vmem:[%s693 + $0x128] sm:$0xff] %v2268
        %2317 = vst [vmem:[%s693 + $0x130] sm:$0xff] %v2269
        %2318 = vst [vmem:[%s693 + $0x138] sm:$0xff] %v2270
        %2319 = vst [vmem:[%s693 + $0x140] sm:$0xff] %v2271
        %2320 = vst [vmem:[%s693 + $0x148] sm:$0xff] %v2272
        %2321 = vst [vmem:[%s693 + $0x150] sm:$0xff] %v2273
        %2322 = vst [vmem:[%s693 + $0x158] sm:$0xff] %v2274
        %2323 = vst [vmem:[%s693 + $0x160] sm:$0xff] %v2275
        %2324 = vst [vmem:[%s693 + $0x168] sm:$0xff] %v2276
        %2325 = vst [vmem:[%s693 + $0x170] sm:$0xff] %v2277
        %2326 = vst [vmem:[%s693 + $0x178] sm:$0xff] %v2278
        %v2327 = vmul.f32 %v861, %v863
        %v2328 = vmul.f32 %v867, %v869
        %v2329 = vmul.f32 %v873, %v875
        %v2330 = vmul.f32 %v879, %v881
        %v2331 = vmul.f32 %v885, %v887
        %v2332 = vmul.f32 %v891, %v893
        %v2333 = vmul.f32 %v897, %v899
        %v2334 = vmul.f32 %v903, %v905
        %v2335 = vmul.f32 %v909, %v911
        %v2336 = vmul.f32 %v915, %v917
        %v2337 = vmul.f32 %v921, %v923
        %v2338 = vmul.f32 %v927, %v929
        %v2339 = vmul.f32 %v933, %v935
        %v2340 = vmul.f32 %v939, %v941
        %v2341 = vmul.f32 %v945, %v947
        %v2342 = vmul.f32 %v951, %v953
        %v2343 = vmul.f32 %v957, %v959
        %v2344 = vmul.f32 %v963, %v965
        %v2345 = vmul.f32 %v969, %v971
        %v2346 = vmul.f32 %v975, %v977
        %v2347 = vmul.f32 %v981, %v983
        %v2348 = vmul.f32 %v987, %v989
        %v2349 = vmul.f32 %v993, %v995
        %v2350 = vmul.f32 %v999, %v1001
        %v2351 = vmul.f32 %v1005, %v1007
        %v2352 = vmul.f32 %v1011, %v1013
        %v2353 = vmul.f32 %v1017, %v1019
        %v2354 = vmul.f32 %v1023, %v1025
        %v2355 = vmul.f32 %v1029, %v1031
        %v2356 = vmul.f32 %v1035, %v1037
        %v2357 = vmul.f32 %v1041, %v1043
        %v2358 = vmul.f32 %v1047, %v1049
        %v2359 = vadd.f32 %v2327, %v2343
        %v2360 = vadd.f32 %v2328, %v2344
        %v2361 = vadd.f32 %v2329, %v2345
        %v2362 = vadd.f32 %v2330, %v2346
        %v2363 = vadd.f32 %v2331, %v2347
        %v2364 = vadd.f32 %v2332, %v2348
        %v2365 = vadd.f32 %v2333, %v2349
        %v2366 = vadd.f32 %v2334, %v2350
        %v2367 = vadd.f32 %v2335, %v2351
        %v2368 = vadd.f32 %v2336, %v2352
        %v2369 = vadd.f32 %v2337, %v2353
        %v2370 = vadd.f32 %v2338, %v2354
        %v2371 = vadd.f32 %v2339, %v2355
        %v2372 = vadd.f32 %v2340, %v2356
        %v2373 = vadd.f32 %v2341, %v2357
        %v2374 = vadd.f32 %v2342, %v2358
        %v2375 = vmul.f32 %v1053, %v1055
        %v2376 = vmul.f32 %v1059, %v1061
        %v2377 = vmul.f32 %v1065, %v1067
        %v2378 = vmul.f32 %v1071, %v1073
        %v2379 = vmul.f32 %v1077, %v1079
        %v2380 = vmul.f32 %v1083, %v1085
        %v2381 = vmul.f32 %v1089, %v1091
        %v2382 = vmul.f32 %v1095, %v1097
        %v2383 = vmul.f32 %v1101, %v1103
        %v2384 = vmul.f32 %v1107, %v1109
        %v2385 = vmul.f32 %v1113, %v1115
        %v2386 = vmul.f32 %v1119, %v1121
        %v2387 = vmul.f32 %v1125, %v1127
        %v2388 = vmul.f32 %v1131, %v1133
        %v2389 = vmul.f32 %v1137, %v1139
        %v2390 = vmul.f32 %v1143, %v1145
        %v2391 = vadd.f32 %v2359, %v2375
        %v2392 = vadd.f32 %v2360, %v2376
        %v2393 = vadd.f32 %v2361, %v2377
        %v2394 = vadd.f32 %v2362, %v2378
        %v2395 = vadd.f32 %v2363, %v2379
        %v2396 = vadd.f32 %v2364, %v2380
        %v2397 = vadd.f32 %v2365, %v2381
        %v2398 = vadd.f32 %v2366, %v2382
        %v2399 = vadd.f32 %v2367, %v2383
        %v2400 = vadd.f32 %v2368, %v2384
        %v2401 = vadd.f32 %v2369, %v2385
        %v2402 = vadd.f32 %v2370, %v2386
        %v2403 = vadd.f32 %v2371, %v2387
        %v2404 = vadd.f32 %v2372, %v2388
        %v2405 = vadd.f32 %v2373, %v2389
        %v2406 = vadd.f32 %v2374, %v2390
        %v2407 = vmul.f32 %v2391, %v1994
        %v2408 = vmul.f32 %v2392, %v2000
        %v2409 = vmul.f32 %v2393, %v2006
        %v2410 = vmul.f32 %v2394, %v2012
        %v2411 = vmul.f32 %v2395, %v2018
        %v2412 = vmul.f32 %v2396, %v2024
        %v2413 = vmul.f32 %v2397, %v2030
        %v2414 = vmul.f32 %v2398, %v2036
        %v2415 = vmul.f32 %v2399, %v2042
        %v2416 = vmul.f32 %v2400, %v2048
        %v2417 = vmul.f32 %v2401, %v2054
        %v2418 = vmul.f32 %v2402, %v2060
        %v2419 = vmul.f32 %v2403, %v2066
        %v2420 = vmul.f32 %v2404, %v2072
        %v2421 = vmul.f32 %v2405, %v2078
        %v2422 = vmul.f32 %v2406, %v2084
        %v2423 = vadd.f32 %v2407, %v2153
        %v2424 = vadd.f32 %v2408, %v2158
        %v2425 = vadd.f32 %v2409, %v2163
        %v2426 = vadd.f32 %v2410, %v2168
        %v2427 = vadd.f32 %v2411, %v2173
        %v2428 = vadd.f32 %v2412, %v2178
        %v2429 = vadd.f32 %v2413, %v2183
        %v2430 = vadd.f32 %v2414, %v2188
        %v2431 = vadd.f32 %v2415, %v2193
        %v2432 = vadd.f32 %v2416, %v2198
        %v2433 = vadd.f32 %v2417, %v2203
        %v2434 = vadd.f32 %v2418, %v2208
        %v2435 = vadd.f32 %v2419, %v2213
        %v2436 = vadd.f32 %v2420, %v2218
        %v2437 = vadd.f32 %v2421, %v2223
        %v2438 = vadd.f32 %v2422, %v2228
        %2439 = vst [vmem:[%s686] sm:$0xff] %v2423
        %2440 = vst [vmem:[%s686 + $0x8] sm:$0xff] %v2424
        %2441 = vst [vmem:[%s686 + $0x10] sm:$0xff] %v2425
        %2442 = vst [vmem:[%s686 + $0x18] sm:$0xff] %v2426
        %2443 = vst [vmem:[%s686 + $0x20] sm:$0xff] %v2427
        %2444 = vst [vmem:[%s686 + $0x28] sm:$0xff] %v2428
        %2445 = vst [vmem:[%s686 + $0x30] sm:$0xff] %v2429
        %2446 = vst [vmem:[%s686 + $0x38] sm:$0xff] %v2430
        %2447 = vst [vmem:[%s686 + $0x40] sm:$0xff] %v2431
        %2448 = vst [vmem:[%s686 + $0x48] sm:$0xff] %v2432
        %2449 = vst [vmem:[%s686 + $0x50] sm:$0xff] %v2433
        %2450 = vst [vmem:[%s686 + $0x58] sm:$0xff] %v2434
        %2451 = vst [vmem:[%s686 + $0x60] sm:$0xff] %v2435
        %2452 = vst [vmem:[%s686 + $0x68] sm:$0xff] %v2436
        %2453 = vst [vmem:[%s686 + $0x70] sm:$0xff] %v2437
        %2454 = vst [vmem:[%s686 + $0x78] sm:$0xff] %v2438
        %s2455 = sand.u32 %s216, 1
        %s2456 = scalar_lea.sflag [#allocation4], %s2455
        %s2457 = sand.u32 %s216, 1
        %s2458 = smul.addr %s2457, 128
        %s2459 = scalar_lea.vmem [#allocation6], %s2458
        %s2460 = sand.u32 %s242, 1
        %s2461 = scalar_lea.sflag [#allocation8], %s2460
        %s2462 = sand.u32 %s242, 1
        %s2463 = smul.addr %s2462, 384
        %s2464 = scalar_lea.vmem [#allocation7], %s2463
        // Predicated region
        $region109: #{update_block_3nf.1} parent=99 // pred_check
          %p2465 = pneg %p226
        $region110: #{update_block_3nf.1} parent=99 // pred_check_branch
          %2467 = sbr.rel (%p2465) target = $region112
        $region111: #{update_block_3nf.1} parent=99 // pred_region
          %s2468 = smul.u32 16, %s30
          %s2469 = ssub.s32 25, %s2468
          %p2470 = scmp.lt.s32.totalorder %s2469, 16
          %s2471 = scalar_select %p2470, %s2469, 16
          %s2472 = smul.u32 128, %s2471
          %s2474 = ssub.s32 2048, %s2472
          %2475 = vsyncadd %s2456, %s2474
          %p2476 = scmp.ne.s32.totalorder 0, %s2472
          %s2477 = smul.addr %s2468, 128
          %s2478 = scalar_lea.hbm %s8, %s2477
          %s2479 = smul.u32 8, %s2471
          %s2480 = sshll.u32 %s2459, 4
          %s2481 = int_to_ptr.vmem [resolvable:$true] %s2480
          %s2482 = sshll.u32 %s2479, 4
          %2486 = dma.vmem_to_hbm [thread:$0]  (%p2476), %s2481, %s2482, %s2478, %s2456, 128, 128, 8
        $region112: #{update_block_3nf.1} parent=99 // pred_fallthru
          _
        // Predicated region
        $region113: #{update_block_3nf.1} parent=99 // pred_check
          %p2487 = pneg %p252
        $region114: #{update_block_3nf.1} parent=99 // pred_check_branch
          %2489 = sbr.rel (%p2487) target = $region116
        $region115: #{update_block_3nf.1} parent=99 // pred_region
          #allocation10 [shape = 'u32[6]{0}', space=smem, size = 0x18, scoped, tag = 'DMA stride descriptor']
          %s2490 = smul.u32 16, %s30
          %s2491 = ssub.s32 25, %s2490
          %p2492 = scmp.lt.s32.totalorder %s2491, 16
          %s2493 = scalar_select %p2492, %s2491, 16
          %s2494 = smul.u32 384, %s2493
          %s2496 = ssub.s32 6144, %s2494
          %2497 = vsyncadd %s2461, %s2496
          %p2498 = scmp.ne.s32.totalorder 0, %s2494
          %s2499 = smul.addr %s2490, 128
          %s2500 = scalar_lea.hbm %s9, %s2499
          %s2501 = smul.u32 8, %s2493
          %s2502 = smul.u32 %s2501, 3
          %s2504 = sshll.u32 1, 14
          %s2505 = sxor.u32 4294967295, %s2504
          %s2508 = sshll.u32 7, 18
          %s2509 = sxor.u32 4294967295, %s2508
          %s2510 = sand.u32 0, %s2509
          %s2512 = sor.u32 %s2510, 0
          %s2513 = sshll.u32 %s2464, 4
          %s2514 = int_to_ptr.vmem [resolvable:$true] %s2513
          %s2515 = sshll.u32 %s2502, 4
          %2520 = sst [smem:[#allocation10]] 2048
          %s2521 = scalar_lea.smem [#allocation10], 1
          %2522 = sst [smem:[%s2521]] 3200
          %s2523 = scalar_lea.smem [#allocation10], 2
          %2524 = sst [smem:[%s2523]] %s2493
          %s2525 = scalar_lea.smem [#allocation10], 3
          %2526 = sst [smem:[%s2525]] 128
          %s2527 = scalar_lea.smem [#allocation10], 4
          %2528 = sst [smem:[%s2527]] 128
          %s2529 = scalar_lea.smem [#allocation10], 5
          %2530 = sst [smem:[%s2529]] 8
          %2532 = dma.general (%p2498), %s2514, %s2515, %s2500, %s2461, 131072, [#allocation10], %s2512, 0
        $region116: #{update_block_3nf.1} parent=99 // pred_fallthru
          _
      $region100: #{update_block_3nf.1} parent=5 // pred_fallthru
        _
      %p2533 = scmp.le.s32.totalorder 2, %s25
      // Predicated region
      $region117: #{update_block_3nf.1} parent=5 // pred_check
        %p2534 = pneg %p2533
      $region118: #{update_block_3nf.1} parent=5 // pred_check_branch
        %2536 = sbr.rel (%p2534) target = $region120
      $region119: #{update_block_3nf.1} parent=5 // pred_region
        %s2537 = ssub.s32 %s25, 2
        // Predicated region
        $region121: #{update_block_3nf.1} parent=119 // pred_check
          %p2538 = pneg %p232
        $region122: #{update_block_3nf.1} parent=119 // pred_check_branch
          %2540 = sbr.rel (%p2538) target = $region124
        $region123: #{update_block_3nf.1} parent=119 // pred_region
          %s2541 = sand.u32 %s217, 1
          %s2542 = scalar_lea.sflag [#allocation4], %s2541
          %s2543 = sand.u32 %s217, 1
          %s2544 = smul.addr %s2543, 128
          %s2545 = scalar_lea.vmem [#allocation6], %s2544
          %2546 = dma.done %s2542, 2048
        $region124: #{update_block_3nf.1} parent=119 // pred_fallthru
          _
        // Predicated region
        $region125: #{update_block_3nf.1} parent=119 // pred_check
          %p2547 = pneg %p258
        $region126: #{update_block_3nf.1} parent=119 // pred_check_branch
          %2549 = sbr.rel (%p2547) target = $region128
        $region127: #{update_block_3nf.1} parent=119 // pred_region
          %s2550 = sand.u32 %s243, 1
          %s2551 = scalar_lea.sflag [#allocation8], %s2550
          %s2552 = sand.u32 %s243, 1
          %s2553 = smul.addr %s2552, 384
          %s2554 = scalar_lea.vmem [#allocation7], %s2553
          %2555 = dma.done %s2551, 6144
        $region128: #{update_block_3nf.1} parent=119 // pred_fallthru
          _
      $region120: #{update_block_3nf.1} parent=5 // pred_fallthru
        _
    $region6: #{update_block_3nf.1} parent=1 // loop_footer
      %s29 = sadd.s32 1, %s25
    $region7: #{update_block_3nf.1} parent=1 // loop_footer_branch
      %24 = sbr.rel target = $region3
    $region8: #{update_block_3nf.1} parent=1 // loop_exit
      _
    %2556 = vsyncpa [#allocation3], 1
    %s2557 = scalar_lea.sflag [#allocation3], 1
    %2558 = vsyncpa %s2557, 1
    %2559 = vsyncpa [#allocation4], 1
    %s2560 = scalar_lea.sflag [#allocation4], 1
    %2561 = vsyncpa %s2560, 1
    %2562 = vsyncpa [#allocation8], 1
    %s2563 = scalar_lea.sflag [#allocation8], 1
    %2564 = vsyncpa %s2563, 1

</llo_original>
